<compile_context>
chip_gen: v5e
topology: v5e:2x2
jax: 0.10.0
libtpu: 0.0.40
codegen_flags: <defaults>
</compile_context>

<pallas_src>
import numpy as np

import jax
import jax.numpy as jnp
from jax.experimental import pallas as pl
from jax.experimental.pallas import tpu as pltpu

LANE = 128     # lane width: logits lane dim padded to 128 (lane-dense store)
SUB = 8        # f32 sublane tile: OC / C are padded to 8, not 128 (perf review)
KSIZE = 3      # conv kernel (3x3, padding=1)
POOL = 8       # AvgPool2d(kernel_size=8, stride=8)


def _round_up(x, m):
    return (x + m - 1) // m * m


# ----------------------- one-time host-side weight repacking -----------------------

def prepare_params(conv_w, conv_b, fc_w, fc_b, H, W, tb):
    """Permute/pad all weights once so the kernel never permutes activations."""
    conv_w = np.asarray(conv_w, np.float32)
    conv_b = np.asarray(conv_b, np.float32)
    fc_w = np.asarray(fc_w, np.float32)
    fc_b = np.asarray(fc_b, np.float32)

    OC, C, KH, KW = conv_w.shape
    NC, F = fc_w.shape
    assert KH == KSIZE and KW == KSIZE
    assert H % POOL == 0 and W % POOL == 0
    ph, pw = H // POOL, W // POOL
    n_cells = ph * pw
    assert F == OC * n_cells

    OCP = _round_up(OC, SUB)          # sublane-minimum padding only
    CP = _round_up(C, SUB)
    NCP = _round_up(NC, LANE)         # logits stay lane-dense

    HP, WP = H + 2, W + 2             # 1-pixel conv halo
    LPAD = _round_up(HP * WP, LANE)   # per-image lane-flattened length
    TBL = tb * LPAD                   # TB images side by side along lanes
    GS = _round_up(tb, 8)             # sublane-aligned per-cell row group in `sel`

    # conv taps folded into one K = 9*CP contraction: wc[oc, tap*CP + c]
    wc = np.zeros((OCP, KH * KW * CP), np.float32)
    for kh in range(KH):
        for kw in range(KW):
            tap = kh * KW + kw
            wc[:OC, tap * CP: tap * CP + C] = conv_w[:, :, kh, kw]
    bc = np.zeros((OCP, 1), np.float32)
    bc[:OC, 0] = conv_b

    # block-diagonal pooling selector (1/64 scale folded in), rows grouped p-major:
    #   sel[p*GS + t, t*LPAD + h*WP + w] = 1/(POOL*POOL)  for cell(h, w) == p
    sel = np.zeros((n_cells * GS, TBL), np.float32)
    inv = 1.0 / (POOL * POOL)
    for t in range(tb):
        for h in range(H):
            for w in range(W):
                p = (h // POOL) * pw + (w // POOL)
                sel[p * GS + t, t * LPAD + h * WP + w] = inv

    # fc weight per pooling cell: wfc[p, oc, nc] = fc_w[nc, oc*n_cells + p]
    # (torch flatten order of (B, OC, ph, pw) is oc*n_cells + p)
    wfc = np.zeros((n_cells, OCP, NCP), np.float32)
    for p in range(n_cells):
        wfc[p, :OC, :NC] = fc_w[:, p::n_cells].T
    bfc = np.zeros((1, NCP), np.float32)
    bfc[0, :NC] = fc_b

    params = {"wc": jnp.asarray(wc), "bc": jnp.asarray(bc), "sel": jnp.asarray(sel),
              "wfc": jnp.asarray(wfc), "bfc": jnp.asarray(bfc)}
    meta = dict(OC=OC, C=C, OCP=OCP, CP=CP, NCP=NCP, n_cells=n_cells,
                HP=HP, WP=WP, LPAD=LPAD, TB=tb, GS=GS, TBL=TBL)
    return params, meta


# ----------------------------- fused forward -----------------------------

def make_forward(meta, num_classes):
    CP, OCP, NCP = meta["CP"], meta["CP"] * 0 + meta["OCP"], meta["NCP"]
    NCELL, HP, WP = meta["n_cells"], meta["HP"], meta["WP"]
    LPAD, TB, GS, TBL = meta["LPAD"], meta["TB"], meta["GS"], meta["TBL"]

    def kernel(x_ref, wc_ref, bc_ref, sel_ref, wfc_ref, bfc_ref, o_ref):
        img = x_ref[0]                                        # [CP, TB*LPAD]

        # --- Conv2d(3x3, pad=1): fold the 9 taps into a single K = 9*CP MXU dot.
        # Tap (kh, kw) needs img[:, j + off] at output column j; build that via a
        # lane roll (numpy convention: roll(x, s)[j] = x[(j - s) % n], s = TBL-off).
        pieces = []
        for kh in range(KSIZE):
            for kw in range(KSIZE):
                off = kh * WP + kw
                if off == 0:
                    pieces.append(img)
                else:
                    pieces.append(pltpu.roll(img, shift=TBL - off, axis=1))
        stacked = jnp.concatenate(pieces, axis=0)             # [9*CP, TB*LPAD]
        conv = jnp.dot(wc_ref[...], stacked,
                       preferred_element_type=jnp.float32)    # [OCP, TB*LPAD]
        y = jnp.maximum(conv + bc_ref[...], 0.0)              # bias + ReLU (VPU)

        # --- AvgPool2d(8,8) for all TB images: one MXU dot (A @ B^T form).
        pooled = jax.lax.dot_general(
            sel_ref[...], y, (((1,), (1,)), ((), ())),
            preferred_element_type=jnp.float32)               # [NCELL*GS, OCP]

        # --- Flatten + Linear with the host-permuted weight: one dot per cell,
        #     M = TB images (rows p*GS..p*GS+TB of `pooled` belong to cell p).
        acc = None
        for p in range(NCELL):
            d = jnp.dot(pooled[p * GS: p * GS + TB, :], wfc_ref[p],
                        preferred_element_type=jnp.float32)   # [TB, NCP]
            acc = d if acc is None else acc + d
        o_ref[0] = acc + bfc_ref[...]                         # lane-dense [TB, 128]

    @jax.jit
    def forward(x, params):
        B, C, H, W = x.shape
        Bp = _round_up(B, TB)
        G = Bp // TB

        # Tiny host-side prep (~12 KiB/image): pad batch & channels, add the conv
        # halo, flatten (h, w) row-major onto lanes, pad to LPAD, then lay TB
        # images side by side along the lane axis for each grid step.
        xp = jnp.pad(x, ((0, Bp - B), (0, CP - C), (1, 1), (1, 1)))
        xp = xp.reshape(Bp, CP, HP * WP)
        xp = jnp.pad(xp, ((0, 0), (0, 0), (0, LPAD - HP * WP)))
        xp = xp.reshape(G, TB, CP, LPAD).transpose(0, 2, 1, 3).reshape(G, CP, TBL)

        out = pl.pallas_call(
            kernel,
            out_shape=jax.ShapeDtypeStruct((G, TB, NCP), jnp.float32),
            grid=(G,),
            in_specs=[
                pl.BlockSpec((1, CP, TBL), lambda g: (g, 0, 0)),           # image tile
                pl.BlockSpec((OCP, KSIZE * KSIZE * CP), lambda g: (0, 0)),  # conv taps
                pl.BlockSpec((OCP, 1), lambda g: (0, 0)),                   # conv bias
                pl.BlockSpec((NCELL * GS, TBL), lambda g: (0, 0)),          # pool selector
                pl.BlockSpec((NCELL, OCP, NCP), lambda g: (0, 0, 0)),       # fc weight
                pl.BlockSpec((1, NCP), lambda g: (0, 0)),                   # fc bias
            ],
            out_specs=pl.BlockSpec((1, TB, NCP), lambda g: (g, 0, 0)),
            compiler_params=pltpu.CompilerParams(
                dimension_semantics=("parallel",)),            # v7x: 2 TCs split batch
        )(xp, params["wc"], params["bc"], params["sel"],
          params["wfc"], params["bfc"])

        return out.reshape(Bp, NCP)[:B, :num_classes]

    return forward


# ----------------------------- reference (pure JAX) -----------------------------

def reference_forward(x, conv_w, conv_b, fc_w, fc_b):
    hi = jax.lax.Precision.HIGHEST
    y = jax.lax.conv_general_dilated(
        x, conv_w, window_strides=(1, 1), padding=((1, 1), (1, 1)),
        dimension_numbers=("NCHW", "OIHW", "NCHW"), precision=hi,
    ) + conv_b[None, :, None, None]
    y = jnp.maximum(y, 0.0)
    B, OC, H, W = y.shape
    pooled = y.reshape(B, OC, H // POOL, POOL, W // POOL, POOL).mean(axis=(3, 5))
    feat = pooled.reshape(B, -1)
    return jnp.dot(feat, fc_w.T, precision=hi) + fc_b


# ----------------------------- main -----------------------------

if __name__ == "__main__":
    key = jax.random.PRNGKey(0)
    k_x, k_cw, k_cb, k_fw, k_fb = jax.random.split(key, 5)

    B, C, H, W = 8, 3, 16, 16
    OC = 8
    num_classes = 10
    n_cells = (H // POOL) * (W // POOL)
    output_dim = OC * n_cells                       # Linear(in_features=32, out=10)

    x = jax.random.normal(k_x, (B, C, H, W), jnp.float32)
    conv_w = 0.1 * jax.random.normal(k_cw, (OC, C, KSIZE, KSIZE), jnp.float32)
    conv_b = 0.1 * jax.random.normal(k_cb, (OC,), jnp.float32)
    fc_w = 0.1 * jax.random.normal(k_fw, (num_classes, output_dim), jnp.float32)
    fc_b = 0.1 * jax.random.normal(k_fb, (num_classes,), jnp.float32)

    # TB=4 images per grid step: amortizes per-step overhead while still leaving
    # 2 grid steps so dimension_semantics=("parallel",) can use both v7x TCs.
    TB = 4
    params, meta = prepare_params(conv_w, conv_b, fc_w, fc_b, H, W, TB)
    forward = make_forward(meta, num_classes)

    logits = jax.block_until_ready(forward(x, params))

    ref = reference_forward(x, conv_w, conv_b, fc_w, fc_b)
    assert logits.shape == (B, num_classes)
    err = float(jnp.max(jnp.abs(logits - ref)))
    assert err < 2e-3, f"mismatch vs reference: max abs err {err}"

    print("KERNEL_OK")
</pallas_src>

<mosaic_0001>
module attributes {stable_mosaic.version = 11 : i64} {
  func.func @kernel(%arg0: i32, %arg1: memref<1x8x1536xf32, #tpu.memory_space<vmem>>, %arg2: memref<8x72xf32, #tpu.memory_space<vmem>>, %arg3: memref<8x1xf32, #tpu.memory_space<vmem>>, %arg4: memref<32x1536xf32, #tpu.memory_space<vmem>>, %arg5: memref<4x8x128xf32, #tpu.memory_space<vmem>>, %arg6: memref<1x128xf32, #tpu.memory_space<vmem>>, %arg7: memref<1x4x128xf32, #tpu.memory_space<vmem>>) attributes {dimension_semantics = [#tpu.dimension_semantics<parallel>], iteration_bounds = array<i64: 2>, scalar_prefetch = 0 : i64, scratch_operands = 0 : i64, tpu.core_type = #tpu.core_type<tc>, window_params = [{transform_indices = @transform_0, window_bounds = array<i64: 1, 8, 1536>}, {pipeline_mode = #tpu.pipeline_mode<synchronous>, transform_indices = @transform_1, window_bounds = array<i64: 8, 72>}, {pipeline_mode = #tpu.pipeline_mode<synchronous>, transform_indices = @transform_2, window_bounds = array<i64: 8, 1>}, {pipeline_mode = #tpu.pipeline_mode<synchronous>, transform_indices = @transform_3, window_bounds = array<i64: 32, 1536>}, {pipeline_mode = #tpu.pipeline_mode<synchronous>, transform_indices = @transform_4, window_bounds = array<i64: 4, 8, 128>}, {pipeline_mode = #tpu.pipeline_mode<synchronous>, transform_indices = @transform_5, window_bounds = array<i64: 1, 128>}, {transform_indices = @transform_6, window_bounds = array<i64: 1, 4, 128>}]} {
    %c0 = arith.constant 0 : index
    %c0_0 = arith.constant 0 : index
    %c0_1 = arith.constant 0 : index
    %0 = vector.load %arg1[%c0, %c0_0, %c0_1] : memref<1x8x1536xf32, #tpu.memory_space<vmem>>, vector<1x8x1536xf32>
    %1 = vector.shape_cast %0 : vector<1x8x1536xf32> to vector<8x1536xf32>
    %c1535_i32 = arith.constant 1535 : i32
    %2 = tpu.dynamic_rotate %1 by %c1535_i32 dim 1 : vector<8x1536xf32>, i32 -> vector<8x1536xf32>
    %c1534_i32 = arith.constant 1534 : i32
    %3 = tpu.dynamic_rotate %1 by %c1534_i32 dim 1 : vector<8x1536xf32>, i32 -> vector<8x1536xf32>
    %c1518_i32 = arith.constant 1518 : i32
    %4 = tpu.dynamic_rotate %1 by %c1518_i32 dim 1 : vector<8x1536xf32>, i32 -> vector<8x1536xf32>
    %c1517_i32 = arith.constant 1517 : i32
    %5 = tpu.dynamic_rotate %1 by %c1517_i32 dim 1 : vector<8x1536xf32>, i32 -> vector<8x1536xf32>
    %c1516_i32 = arith.constant 1516 : i32
    %6 = tpu.dynamic_rotate %1 by %c1516_i32 dim 1 : vector<8x1536xf32>, i32 -> vector<8x1536xf32>
    %c1500_i32 = arith.constant 1500 : i32
    %7 = tpu.dynamic_rotate %1 by %c1500_i32 dim 1 : vector<8x1536xf32>, i32 -> vector<8x1536xf32>
    %c1499_i32 = arith.constant 1499 : i32
    %8 = tpu.dynamic_rotate %1 by %c1499_i32 dim 1 : vector<8x1536xf32>, i32 -> vector<8x1536xf32>
    %c1498_i32 = arith.constant 1498 : i32
    %9 = tpu.dynamic_rotate %1 by %c1498_i32 dim 1 : vector<8x1536xf32>, i32 -> vector<8x1536xf32>
    %10 = tpu.concatenate %1, %2, %3, %4, %5, %6, %7, %8, %9 in 0 : vector<8x1536xf32>, vector<8x1536xf32>, vector<8x1536xf32>, vector<8x1536xf32>, vector<8x1536xf32>, vector<8x1536xf32>, vector<8x1536xf32>, vector<8x1536xf32>, vector<8x1536xf32> -> vector<72x1536xf32>
    %c0_2 = arith.constant 0 : index
    %c0_3 = arith.constant 0 : index
    %11 = vector.load %arg2[%c0_2, %c0_3] : memref<8x72xf32, #tpu.memory_space<vmem>>, vector<8x72xf32>
    %cst = arith.constant dense<0.000000e+00> : vector<8x1536xf32>
    %12 = tpu.matmul %11, %10, %cst {dimension_numbers = #tpu.dot_dimension_numbers<[1], [0], [0], [1], [0, 0, 1, 1], [], []>} : vector<8x72xf32>, vector<72x1536xf32>, vector<8x1536xf32> -> vector<8x1536xf32>
    %c0_4 = arith.constant 0 : index
    %c0_5 = arith.constant 0 : index
    %13 = vector.load %arg3[%c0_4, %c0_5] : memref<8x1xf32, #tpu.memory_space<vmem>>, vector<8x1xf32>
    %14 = vector.broadcast %13 : vector<8x1xf32> to vector<8x1536xf32>
    %15 = arith.addf %12, %14 : vector<8x1536xf32>
    %cst_6 = arith.constant 0.000000e+00 : f32
    %16 = vector.broadcast %cst_6 : f32 to vector<8x1536xf32>
    %17 = arith.maximumf %15, %16 : vector<8x1536xf32>
    %c0_7 = arith.constant 0 : index
    %c0_8 = arith.constant 0 : index
    %18 = vector.load %arg4[%c0_7, %c0_8] : memref<32x1536xf32, #tpu.memory_space<vmem>>, vector<32x1536xf32>
    %cst_9 = arith.constant dense<0.000000e+00> : vector<32x8xf32>
    %19 = tpu.matmul %18, %17, %cst_9 {dimension_numbers = #tpu.dot_dimension_numbers<[1], [1], [0], [0], [0, 0, 1, 0], [], []>} : vector<32x1536xf32>, vector<8x1536xf32>, vector<32x8xf32> -> vector<32x8xf32>
    %20 = vector.extract_strided_slice %19 {offsets = [0, 0], sizes = [4, 8], strides = [1, 1]} : vector<32x8xf32> to vector<4x8xf32>
    %c0_10 = arith.constant 0 : index
    %c0_11 = arith.constant 0 : index
    %c0_12 = arith.constant 0 : index
    %21 = vector.load %arg5[%c0_10, %c0_11, %c0_12] : memref<4x8x128xf32, #tpu.memory_space<vmem>>, vector<1x8x128xf32>
    %22 = vector.shape_cast %21 : vector<1x8x128xf32> to vector<8x128xf32>
    %cst_13 = arith.constant dense<0.000000e+00> : vector<4x128xf32>
    %23 = tpu.matmul %20, %22, %cst_13 {dimension_numbers = #tpu.dot_dimension_numbers<[1], [0], [0], [1], [0, 0, 1, 1], [], []>} : vector<4x8xf32>, vector<8x128xf32>, vector<4x128xf32> -> vector<4x128xf32>
    %24 = vector.extract_strided_slice %19 {offsets = [8, 0], sizes = [4, 8], strides = [1, 1]} : vector<32x8xf32> to vector<4x8xf32>
    %c1 = arith.constant 1 : index
    %c0_14 = arith.constant 0 : index
    %c0_15 = arith.constant 0 : index
    %25 = vector.load %arg5[%c1, %c0_14, %c0_15] : memref<4x8x128xf32, #tpu.memory_space<vmem>>, vector<1x8x128xf32>
    %26 = vector.shape_cast %25 : vector<1x8x128xf32> to vector<8x128xf32>
    %cst_16 = arith.constant dense<0.000000e+00> : vector<4x128xf32>
    %27 = tpu.matmul %24, %26, %cst_16 {dimension_numbers = #tpu.dot_dimension_numbers<[1], [0], [0], [1], [0, 0, 1, 1], [], []>} : vector<4x8xf32>, vector<8x128xf32>, vector<4x128xf32> -> vector<4x128xf32>
    %28 = arith.addf %23, %27 : vector<4x128xf32>
    %29 = vector.extract_strided_slice %19 {offsets = [16, 0], sizes = [4, 8], strides = [1, 1]} : vector<32x8xf32> to vector<4x8xf32>
    %c2 = arith.constant 2 : index
    %c0_17 = arith.constant 0 : index
    %c0_18 = arith.constant 0 : index
    %30 = vector.load %arg5[%c2, %c0_17, %c0_18] : memref<4x8x128xf32, #tpu.memory_space<vmem>>, vector<1x8x128xf32>
    %31 = vector.shape_cast %30 : vector<1x8x128xf32> to vector<8x128xf32>
    %cst_19 = arith.constant dense<0.000000e+00> : vector<4x128xf32>
    %32 = tpu.matmul %29, %31, %cst_19 {dimension_numbers = #tpu.dot_dimension_numbers<[1], [0], [0], [1], [0, 0, 1, 1], [], []>} : vector<4x8xf32>, vector<8x128xf32>, vector<4x128xf32> -> vector<4x128xf32>
    %33 = arith.addf %28, %32 : vector<4x128xf32>
    %34 = vector.extract_strided_slice %19 {offsets = [24, 0], sizes = [4, 8], strides = [1, 1]} : vector<32x8xf32> to vector<4x8xf32>
    %c3 = arith.constant 3 : index
    %c0_20 = arith.constant 0 : index
    %c0_21 = arith.constant 0 : index
    %35 = vector.load %arg5[%c3, %c0_20, %c0_21] : memref<4x8x128xf32, #tpu.memory_space<vmem>>, vector<1x8x128xf32>
    %36 = vector.shape_cast %35 : vector<1x8x128xf32> to vector<8x128xf32>
    %cst_22 = arith.constant dense<0.000000e+00> : vector<4x128xf32>
    %37 = tpu.matmul %34, %36, %cst_22 {dimension_numbers = #tpu.dot_dimension_numbers<[1], [0], [0], [1], [0, 0, 1, 1], [], []>} : vector<4x8xf32>, vector<8x128xf32>, vector<4x128xf32> -> vector<4x128xf32>
    %38 = arith.addf %33, %37 : vector<4x128xf32>
    %c0_23 = arith.constant 0 : index
    %c0_24 = arith.constant 0 : index
    %39 = vector.load %arg6[%c0_23, %c0_24] : memref<1x128xf32, #tpu.memory_space<vmem>>, vector<1x128xf32>
    %40 = vector.broadcast %39 : vector<1x128xf32> to vector<4x128xf32>
    %41 = arith.addf %38, %40 : vector<4x128xf32>
    %c0_25 = arith.constant 0 : index
    %c0_26 = arith.constant 0 : index
    %c0_27 = arith.constant 0 : index
    %42 = vector.load %arg7[%c0_25, %c0_26, %c0_27] : memref<1x4x128xf32, #tpu.memory_space<vmem>>, vector<1x4x128xf32>
    %43 = vector.shape_cast %42 : vector<1x4x128xf32> to vector<4x128xf32>
    %44 = vector.shape_cast %41 : vector<4x128xf32> to vector<1x4x128xf32>
    tpu.vector_store %arg7[%c0_25, %c0_26, %c0_27], %44 {strides = array<i32>} : memref<1x4x128xf32, #tpu.memory_space<vmem>>, vector<1x4x128xf32>,
    return
  }
  func.func @transform_0(%arg0: i32) -> (i32, i32, i32) {
    %c0_i32 = arith.constant 0 : i32
    %c0_i32_0 = arith.constant 0 : i32
    %c0_i32_1 = arith.constant 0 : i32
    return %arg0, %c0_i32, %c0_i32_0 : i32, i32, i32
  }
  func.func @transform_1(%arg0: i32) -> (i32, i32) {
    %c0_i32 = arith.constant 0 : i32
    %c0_i32_0 = arith.constant 0 : i32
    %c0_i32_1 = arith.constant 0 : i32
    return %c0_i32, %c0_i32_0 : i32, i32
  }
  func.func @transform_2(%arg0: i32) -> (i32, i32) {
    %c0_i32 = arith.constant 0 : i32
    %c0_i32_0 = arith.constant 0 : i32
    %c0_i32_1 = arith.constant 0 : i32
    return %c0_i32, %c0_i32_0 : i32, i32
  }
  func.func @transform_3(%arg0: i32) -> (i32, i32) {
    %c0_i32 = arith.constant 0 : i32
    %c0_i32_0 = arith.constant 0 : i32
    %c0_i32_1 = arith.constant 0 : i32
    return %c0_i32, %c0_i32_0 : i32, i32
  }
  func.func @transform_4(%arg0: i32) -> (i32, i32, i32) {
    %c0_i32 = arith.constant 0 : i32
    %c0_i32_0 = arith.constant 0 : i32
    %c0_i32_1 = arith.constant 0 : i32
    %c0_i32_2 = arith.constant 0 : i32
    return %c0_i32, %c0_i32_0, %c0_i32_1 : i32, i32, i32
  }
  func.func @transform_5(%arg0: i32) -> (i32, i32) {
    %c0_i32 = arith.constant 0 : i32
    %c0_i32_0 = arith.constant 0 : i32
    %c0_i32_1 = arith.constant 0 : i32
    return %c0_i32, %c0_i32_0 : i32, i32
  }
  func.func @transform_6(%arg0: i32) -> (i32, i32, i32) {
    %c0_i32 = arith.constant 0 : i32
    %c0_i32_0 = arith.constant 0 : i32
    %c0_i32_1 = arith.constant 0 : i32
    return %arg0, %c0_i32, %c0_i32_0 : i32, i32, i32
  }
}

</mosaic_0001>

<llo_original>
// kernel: forward.1
$region0: #{forward.1}
  #allocation0 [shape = 'u32[]', space=smem, size = 0x4, offset = 0x4, fixed_abs, tag = 'smem constant byte address 0x4 - core index']
  #allocation1 [shape = 'u32[72,128]{1,0:T(1,128)}', space=vmem, size = 0x9000, scoped, tag = 'internal scratch']
  %s0 = inlined_call_operand.vmem [shape: f32[2,8,1536], index: 0, kind: input, shape index: {}]
  %s1 = inlined_call_operand.vmem [shape: f32[8,72], index: 1, kind: input, shape index: {}]
  %s2 = inlined_call_operand.vmem [shape: f32[8,1], index: 2, kind: input, shape index: {}]
  %s3 = inlined_call_operand.vmem [shape: f32[32,1536], index: 3, kind: input, shape index: {}]
  %s4 = inlined_call_operand.vmem [shape: f32[4,8,128], index: 4, kind: input, shape index: {}]
  %s5 = inlined_call_operand.vmem [shape: f32[1,128], index: 5, kind: input, shape index: {}]
  %s6 = inlined_call_operand.hbm [shape: f32[2,4,128], index: 6, kind: output, shape index: {}]
  %s7 = sld [smem:[#allocation0]]
  $region57: #{forward.1} parent=0
    _
  %s9 = ssub.s32 1, %s7
  %s10 = scalar_select 0, %s9, %s7
  $region1: #{forward.1} parent=0
    #allocation2 [shape = 'u8[4096]{0}', space=vmem, size = 0x1000, scoped, tag = 'output window, operand 0']
    #allocation3 [shape = 's32[2]{0}', space=sflag, size = 0x8, scoped, tag = 'scoped memory for forward.1']
    %11 = vsyncpa [#allocation3], 0
    %s12 = scalar_lea.sflag [#allocation3], 1
    %13 = vsyncpa %s12, 0
    loop: start=0, step=1, limit=4
    $region2: #{forward.1} parent=1 // loop_pre_header
      _
    $region3: #{forward.1} parent=1 // loop_header
      %s15 = sphi 0, %s19
      %p16 = scmp.ge.s32.totalorder %s15, 4
      %s25 = sphi 0, %s27
      %s28 = sphi 0, %s25
      %s29 = sphi 0, %s28
      %s45 = sphi 0, %s29
      %s49 = sphi 0, %s49
      %s51 = sphi 0, %s49
      %s52 = sphi 0, %s51
      %s66 = sphi 0, %s52
      %s70 = sphi 0, %s70
      %s72 = sphi 0, %s70
      %s73 = sphi 0, %s72
      %s87 = sphi 0, %s73
      %s91 = sphi 0, %s91
      %s93 = sphi 0, %s91
      %s94 = sphi 0, %s93
      %s108 = sphi 0, %s94
      %s112 = sphi 0, %s112
      %s114 = sphi 0, %s112
      %s115 = sphi 0, %s114
      %s129 = sphi 0, %s115
      %s133 = sphi 0, %s133
      %s135 = sphi 0, %s133
      %s136 = sphi 0, %s135
      %s150 = sphi 0, %s136
      %s156 = sphi 0, %s158
      %s159 = sphi 0, %s156
      %s160 = sphi 0, %s159
      %s176 = sphi 0, %s160
    $region4: #{forward.1} parent=1 // loop_header_branch
      %18 = sbr.rel (%p16) target = $region8
    $region5: #{forward.1} parent=1 // loop_body
      %s20 = ssub.s32 %s15, 1
      %s21 = ssub.s32 %s15, 2
      %s22 = sadd.s32 %s15, 1
      %s23 = ssub.s32 %s15, %s22
      %p24 = scmp.eq.s32.totalorder %s23, 0
      %s26 = sadd.s32 %s25, 1
      %s27 = scalar_select %p24, %s25, %s26
      %p30 = pneg %p24
      %p31 = scmp.eq.s32.totalorder %s15, 1
      %p32 = por %p30, %p31
      %p33 = scmp.ne.s32.totalorder %s25, %s28
      %p34 = scmp.eq.s32.totalorder %s15, 0
      %p35 = por %p33, %p34
      %p36 = scmp.ne.s32.totalorder %s25, %s28
      %p37 = scmp.eq.s32.totalorder %s20, 1
      %p38 = por %p36, %p37
      %p39 = scmp.ne.s32.totalorder %s28, %s29
      %p40 = scmp.eq.s32.totalorder %s20, 0
      %p41 = por %p39, %p40
      %p42 = scmp.ne.s32.totalorder %s28, %s29
      %p43 = scmp.eq.s32.totalorder %s21, 1
      %p44 = por %p42, %p43
      %p46 = scmp.ne.s32.totalorder %s29, %s45
      %p47 = scmp.eq.s32.totalorder %s21, 0
      %p48 = por %p46, %p47
      %s50 = sadd.s32 %s49, 1
      %p53 = scmp.eq.s32.totalorder %s15, 1
      %p54 = scmp.ne.s32.totalorder %s49, %s51
      %p55 = scmp.eq.s32.totalorder %s15, 0
      %p56 = por %p54, %p55
      %p57 = scmp.ne.s32.totalorder %s49, %s51
      %p58 = scmp.eq.s32.totalorder %s20, 1
      %p59 = por %p57, %p58
      %p60 = scmp.ne.s32.totalorder %s51, %s52
      %p61 = scmp.eq.s32.totalorder %s20, 0
      %p62 = por %p60, %p61
      %p63 = scmp.ne.s32.totalorder %s51, %s52
      %p64 = scmp.eq.s32.totalorder %s21, 1
      %p65 = por %p63, %p64
      %p67 = scmp.ne.s32.totalorder %s52, %s66
      %p68 = scmp.eq.s32.totalorder %s21, 0
      %p69 = por %p67, %p68
      %s71 = sadd.s32 %s70, 1
      %p74 = scmp.eq.s32.totalorder %s15, 1
      %p75 = scmp.ne.s32.totalorder %s70, %s72
      %p76 = scmp.eq.s32.totalorder %s15, 0
      %p77 = por %p75, %p76
      %p78 = scmp.ne.s32.totalorder %s70, %s72
      %p79 = scmp.eq.s32.totalorder %s20, 1
      %p80 = por %p78, %p79
      %p81 = scmp.ne.s32.totalorder %s72, %s73
      %p82 = scmp.eq.s32.totalorder %s20, 0
      %p83 = por %p81, %p82
      %p84 = scmp.ne.s32.totalorder %s72, %s73
      %p85 = scmp.eq.s32.totalorder %s21, 1
      %p86 = por %p84, %p85
      %p88 = scmp.ne.s32.totalorder %s73, %s87
      %p89 = scmp.eq.s32.totalorder %s21, 0
      %p90 = por %p88, %p89
      %s92 = sadd.s32 %s91, 1
      %p95 = scmp.eq.s32.totalorder %s15, 1
      %p96 = scmp.ne.s32.totalorder %s91, %s93
      %p97 = scmp.eq.s32.totalorder %s15, 0
      %p98 = por %p96, %p97
      %p99 = scmp.ne.s32.totalorder %s91, %s93
      %p100 = scmp.eq.s32.totalorder %s20, 1
      %p101 = por %p99, %p100
      %p102 = scmp.ne.s32.totalorder %s93, %s94
      %p103 = scmp.eq.s32.totalorder %s20, 0
      %p104 = por %p102, %p103
      %p105 = scmp.ne.s32.totalorder %s93, %s94
      %p106 = scmp.eq.s32.totalorder %s21, 1
      %p107 = por %p105, %p106
      %p109 = scmp.ne.s32.totalorder %s94, %s108
      %p110 = scmp.eq.s32.totalorder %s21, 0
      %p111 = por %p109, %p110
      %s113 = sadd.s32 %s112, 1
      %p116 = scmp.eq.s32.totalorder %s15, 1
      %p117 = scmp.ne.s32.totalorder %s112, %s114
      %p118 = scmp.eq.s32.totalorder %s15, 0
      %p119 = por %p117, %p118
      %p120 = scmp.ne.s32.totalorder %s112, %s114
      %p121 = scmp.eq.s32.totalorder %s20, 1
      %p122 = por %p120, %p121
      %p123 = scmp.ne.s32.totalorder %s114, %s115
      %p124 = scmp.eq.s32.totalorder %s20, 0
      %p125 = por %p123, %p124
      %p126 = scmp.ne.s32.totalorder %s114, %s115
      %p127 = scmp.eq.s32.totalorder %s21, 1
      %p128 = por %p126, %p127
      %p130 = scmp.ne.s32.totalorder %s115, %s129
      %p131 = scmp.eq.s32.totalorder %s21, 0
      %p132 = por %p130, %p131
      %s134 = sadd.s32 %s133, 1
      %p137 = scmp.eq.s32.totalorder %s15, 1
      %p138 = scmp.ne.s32.totalorder %s133, %s135
      %p139 = scmp.eq.s32.totalorder %s15, 0
      %p140 = por %p138, %p139
      %p141 = scmp.ne.s32.totalorder %s133, %s135
      %p142 = scmp.eq.s32.totalorder %s20, 1
      %p143 = por %p141, %p142
      %p144 = scmp.ne.s32.totalorder %s135, %s136
      %p145 = scmp.eq.s32.totalorder %s20, 0
      %p146 = por %p144, %p145
      %p147 = scmp.ne.s32.totalorder %s135, %s136
      %p148 = scmp.eq.s32.totalorder %s21, 1
      %p149 = por %p147, %p148
      %p151 = scmp.ne.s32.totalorder %s136, %s150
      %p152 = scmp.eq.s32.totalorder %s21, 0
      %p153 = por %p151, %p152
      %s154 = ssub.s32 %s15, %s22
      %p155 = scmp.eq.s32.totalorder %s154, 0
      %s157 = sadd.s32 %s156, 1
      %s158 = scalar_select %p155, %s156, %s157
      %p161 = pneg %p155
      %p162 = scmp.eq.s32.totalorder %s15, 1
      %p163 = por %p161, %p162
      %p164 = scmp.ne.s32.totalorder %s156, %s159
      %p165 = scmp.eq.s32.totalorder %s15, 0
      %p166 = por %p164, %p165
      %p167 = scmp.ne.s32.totalorder %s156, %s159
      %p168 = scmp.eq.s32.totalorder %s20, 1
      %p169 = por %p167, %p168
      %p170 = scmp.ne.s32.totalorder %s159, %s160
      %p171 = scmp.eq.s32.totalorder %s20, 0
      %p172 = por %p170, %p171
      %p173 = scmp.ne.s32.totalorder %s159, %s160
      %p174 = scmp.eq.s32.totalorder %s21, 1
      %p175 = por %p173, %p174
      %p177 = scmp.ne.s32.totalorder %s160, %s176
      %p178 = scmp.eq.s32.totalorder %s21, 0
      %p179 = por %p177, %p178
      %p180 = scmp.le.s32.totalorder 1, %s15
      %p181 = scmp.lt.s32.totalorder %s15, 3
      %p182 = pnand %p180, %p181
      %p183 = pneg %p182
      // Predicated region
      $region9: #{forward.1} parent=5 // pred_check
        _
      $region10: #{forward.1} parent=5 // pred_check_branch
        %185 = sbr.rel (%p182) target = $region12
      $region11: #{forward.1} parent=5 // pred_region
        %s186 = ssub.s32 %s15, 1
        // Predicated region
        $region13: #{forward.1} parent=11 // pred_check
          %p187 = pneg %p62
        $region14: #{forward.1} parent=11 // pred_check_branch
          %189 = sbr.rel (%p187) target = $region16
        $region15: #{forward.1} parent=11 // pred_region
          _
        $region16: #{forward.1} parent=11 // pred_fallthru
          _
        // Predicated region
        $region17: #{forward.1} parent=11 // pred_check
          %p190 = pneg %p83
        $region18: #{forward.1} parent=11 // pred_check_branch
          %192 = sbr.rel (%p190) target = $region20
        $region19: #{forward.1} parent=11 // pred_region
          _
        $region20: #{forward.1} parent=11 // pred_fallthru
          _
        // Predicated region
        $region21: #{forward.1} parent=11 // pred_check
          %p193 = pneg %p104
        $region22: #{forward.1} parent=11 // pred_check_branch
          %195 = sbr.rel (%p193) target = $region24
        $region23: #{forward.1} parent=11 // pred_region
          _
        $region24: #{forward.1} parent=11 // pred_fallthru
          _
        // Predicated region
        $region25: #{forward.1} parent=11 // pred_check
          %p196 = pneg %p125
        $region26: #{forward.1} parent=11 // pred_check_branch
          %198 = sbr.rel (%p196) target = $region28
        $region27: #{forward.1} parent=11 // pred_region
          _
        $region28: #{forward.1} parent=11 // pred_fallthru
          _
        // Predicated region
        $region29: #{forward.1} parent=11 // pred_check
          %p199 = pneg %p146
        $region30: #{forward.1} parent=11 // pred_check_branch
          %201 = sbr.rel (%p199) target = $region32
        $region31: #{forward.1} parent=11 // pred_region
          _
        $region32: #{forward.1} parent=11 // pred_fallthru
          _
      $region12: #{forward.1} parent=5 // pred_fallthru
        _
      %p202 = scmp.lt.s32.totalorder %s15, 2
      // Predicated region
      $region33: #{forward.1} parent=5 // pred_check
        %p203 = pneg %p202
      $region34: #{forward.1} parent=5 // pred_check_branch
        %205 = sbr.rel (%p203) target = $region36
      $region35: #{forward.1} parent=5 // pred_region
        // Predicated region
        $region37: #{forward.1} parent=35 // pred_check
          %p206 = pneg %p35
        $region38: #{forward.1} parent=35 // pred_check_branch
          %208 = sbr.rel (%p206) target = $region40
        $region39: #{forward.1} parent=35 // pred_region
          %p209 = scmp.lt.s32.totalorder %s15, 1
          %s210 = scalar_select %p209, %s15, 1
          %s211 = smul.addr %s210, 12
          %s212 = smul.addr %s211, 8
          %s213 = scalar_lea.vmem %s0, %s212
        $region40: #{forward.1} parent=35 // pred_fallthru
          _
      $region36: #{forward.1} parent=5 // pred_fallthru
        _
      %p214 = scmp.le.s32.totalorder 1, %s15
      %p215 = scmp.lt.s32.totalorder %s15, 3
      %p216 = pnand %p214, %p215
      %p217 = pneg %p216
      // Predicated region
      $region41: #{forward.1} parent=5 // pred_check
        _
      $region42: #{forward.1} parent=5 // pred_check_branch
        %219 = sbr.rel (%p216) target = $region44
      $region43: #{forward.1} parent=5 // pred_region
        %s220 = ssub.s32 %s15, 1
        %p221 = scmp.lt.s32.totalorder %s20, 1
        %s222 = scalar_select %p221, %s20, 1
        %s223 = smul.addr %s222, 12
        %s224 = smul.addr %s223, 8
        %s225 = scalar_lea.vmem %s0, %s224
        %p226 = pneg %p41
        %p227 = pneg %p38
        %p228 = pneg %p62
        %p229 = pneg %p59
        %p230 = pneg %p83
        %p231 = pneg %p80
        %p232 = pneg %p104
        %p233 = pneg %p101
        %p234 = pneg %p125
        %p235 = pneg %p122
        %p236 = pneg %p146
        %p237 = pneg %p143
        %p238 = pneg %p172
        %p239 = pneg %p169
        %s240 = sand.u32 %s159, 1
        %s241 = scalar_lea.sflag [#allocation3], %s240
        %s242 = sand.u32 %s159, 1
        %s243 = smul.addr %s242, 4
        %s244 = scalar_lea.vmem [#allocation2], %s243
        %p245 = scmp.lt.s32.totalorder %s20, 1
        %s246 = scalar_select %p245, %s20, 1
        %s247 = smul.addr %s246, 12
        %s248 = smul.addr %s247, 8
        %s249 = scalar_lea.vmem %s0, %s248
        %v250 = vld [vmem:[%s249] sm:$0xff]
        %v251 = vld [vmem:[%s249 + $0x8] sm:$0xff]
        %v252 = vld [vmem:[%s249 + $0x10] sm:$0xff]
        %v253 = vld [vmem:[%s249 + $0x18] sm:$0xff]
        %v254 = vld [vmem:[%s249 + $0x20] sm:$0xff]
        %v255 = vld [vmem:[%s249 + $0x28] sm:$0xff]
        %v256 = vld [vmem:[%s249 + $0x30] sm:$0xff]
        %v257 = vld [vmem:[%s249 + $0x38] sm:$0xff]
        %v258 = vld [vmem:[%s249 + $0x40] sm:$0xff]
        %v259 = vld [vmem:[%s249 + $0x48] sm:$0xff]
        %v260 = vld [vmem:[%s249 + $0x50] sm:$0xff]
        %v261 = vld [vmem:[%s249 + $0x58] sm:$0xff]
        %262 = vrot.lane.b32.xlu0 %v250, 127
        %v263 = vpop.permute.xlu0 %262
        %264 = vrot.lane.b32.xlu0 %v251, 127
        %v265 = vpop.permute.xlu0 %264
        %266 = vrot.lane.b32.xlu0 %v252, 127
        %v267 = vpop.permute.xlu0 %266
        %268 = vrot.lane.b32.xlu0 %v253, 127
        %v269 = vpop.permute.xlu0 %268
        %270 = vrot.lane.b32.xlu0 %v254, 127
        %v271 = vpop.permute.xlu0 %270
        %272 = vrot.lane.b32.xlu0 %v255, 127
        %v273 = vpop.permute.xlu0 %272
        %274 = vrot.lane.b32.xlu0 %v256, 127
        %v275 = vpop.permute.xlu0 %274
        %276 = vrot.lane.b32.xlu0 %v257, 127
        %v277 = vpop.permute.xlu0 %276
        %278 = vrot.lane.b32.xlu0 %v258, 127
        %v279 = vpop.permute.xlu0 %278
        %280 = vrot.lane.b32.xlu0 %v259, 127
        %v281 = vpop.permute.xlu0 %280
        %282 = vrot.lane.b32.xlu0 %v260, 127
        %v283 = vpop.permute.xlu0 %282
        %284 = vrot.lane.b32.xlu0 %v261, 127
        %v285 = vpop.permute.xlu0 %284
        %v286 = vlaneseq
        %v287 = vand.u32 %v286, 127
        %vm288 = vcmp.lt.s32.totalorder %v287, 127
        %v289 = vsel %vm288, %v283, %v285
        %v290 = vsel %vm288, %v281, %v283
        %v291 = vsel %vm288, %v279, %v281
        %v292 = vsel %vm288, %v277, %v279
        %v293 = vsel %vm288, %v275, %v277
        %v294 = vsel %vm288, %v273, %v275
        %v295 = vsel %vm288, %v271, %v273
        %v296 = vsel %vm288, %v269, %v271
        %v297 = vsel %vm288, %v267, %v269
        %v298 = vsel %vm288, %v265, %v267
        %v299 = vsel %vm288, %v263, %v265
        %v300 = vsel %vm288, %v285, %v263
        %301 = vrot.lane.b32.xlu0 %v250, 126
        %v302 = vpop.permute.xlu0 %301
        %303 = vrot.lane.b32.xlu0 %v251, 126
        %v304 = vpop.permute.xlu0 %303
        %305 = vrot.lane.b32.xlu0 %v252, 126
        %v306 = vpop.permute.xlu0 %305
        %307 = vrot.lane.b32.xlu0 %v253, 126
        %v308 = vpop.permute.xlu0 %307
        %309 = vrot.lane.b32.xlu0 %v254, 126
        %v310 = vpop.permute.xlu0 %309
        %311 = vrot.lane.b32.xlu0 %v255, 126
        %v312 = vpop.permute.xlu0 %311
        %313 = vrot.lane.b32.xlu0 %v256, 126
        %v314 = vpop.permute.xlu0 %313
        %315 = vrot.lane.b32.xlu0 %v257, 126
        %v316 = vpop.permute.xlu0 %315
        %317 = vrot.lane.b32.xlu0 %v258, 126
        %v318 = vpop.permute.xlu0 %317
        %319 = vrot.lane.b32.xlu0 %v259, 126
        %v320 = vpop.permute.xlu0 %319
        %321 = vrot.lane.b32.xlu0 %v260, 126
        %v322 = vpop.permute.xlu0 %321
        %323 = vrot.lane.b32.xlu0 %v261, 126
        %v324 = vpop.permute.xlu0 %323
        %vm325 = vcmp.lt.s32.totalorder %v287, 126
        %v326 = vsel %vm325, %v322, %v324
        %v327 = vsel %vm325, %v320, %v322
        %v328 = vsel %vm325, %v318, %v320
        %v329 = vsel %vm325, %v316, %v318
        %v330 = vsel %vm325, %v314, %v316
        %v331 = vsel %vm325, %v312, %v314
        %v332 = vsel %vm325, %v310, %v312
        %v333 = vsel %vm325, %v308, %v310
        %v334 = vsel %vm325, %v306, %v308
        %v335 = vsel %vm325, %v304, %v306
        %v336 = vsel %vm325, %v302, %v304
        %v337 = vsel %vm325, %v324, %v302
        %338 = vrot.lane.b32.xlu0 %v250, 110
        %v339 = vpop.permute.xlu0 %338
        %340 = vrot.lane.b32.xlu0 %v251, 110
        %v341 = vpop.permute.xlu0 %340
        %342 = vrot.lane.b32.xlu0 %v252, 110
        %v343 = vpop.permute.xlu0 %342
        %344 = vrot.lane.b32.xlu0 %v253, 110
        %v345 = vpop.permute.xlu0 %344
        %346 = vrot.lane.b32.xlu0 %v254, 110
        %v347 = vpop.permute.xlu0 %346
        %348 = vrot.lane.b32.xlu0 %v255, 110
        %v349 = vpop.permute.xlu0 %348
        %350 = vrot.lane.b32.xlu0 %v256, 110
        %v351 = vpop.permute.xlu0 %350
        %352 = vrot.lane.b32.xlu0 %v257, 110
        %v353 = vpop.permute.xlu0 %352
        %354 = vrot.lane.b32.xlu0 %v258, 110
        %v355 = vpop.permute.xlu0 %354
        %356 = vrot.lane.b32.xlu0 %v259, 110
        %v357 = vpop.permute.xlu0 %356
        %358 = vrot.lane.b32.xlu0 %v260, 110
        %v359 = vpop.permute.xlu0 %358
        %360 = vrot.lane.b32.xlu0 %v261, 110
        %v361 = vpop.permute.xlu0 %360
        %vm362 = vcmp.lt.s32.totalorder %v287, 110
        %v363 = vsel %vm362, %v359, %v361
        %v364 = vsel %vm362, %v357, %v359
        %v365 = vsel %vm362, %v355, %v357
        %v366 = vsel %vm362, %v353, %v355
        %v367 = vsel %vm362, %v351, %v353
        %v368 = vsel %vm362, %v349, %v351
        %v369 = vsel %vm362, %v347, %v349
        %v370 = vsel %vm362, %v345, %v347
        %v371 = vsel %vm362, %v343, %v345
        %v372 = vsel %vm362, %v341, %v343
        %v373 = vsel %vm362, %v339, %v341
        %v374 = vsel %vm362, %v361, %v339
        %375 = vrot.lane.b32.xlu0 %v250, 109
        %v376 = vpop.permute.xlu0 %375
        %377 = vrot.lane.b32.xlu0 %v251, 109
        %v378 = vpop.permute.xlu0 %377
        %379 = vrot.lane.b32.xlu0 %v252, 109
        %v380 = vpop.permute.xlu0 %379
        %381 = vrot.lane.b32.xlu0 %v253, 109
        %v382 = vpop.permute.xlu0 %381
        %383 = vrot.lane.b32.xlu0 %v254, 109
        %v384 = vpop.permute.xlu0 %383
        %385 = vrot.lane.b32.xlu0 %v255, 109
        %v386 = vpop.permute.xlu0 %385
        %387 = vrot.lane.b32.xlu0 %v256, 109
        %v388 = vpop.permute.xlu0 %387
        %389 = vrot.lane.b32.xlu0 %v257, 109
        %v390 = vpop.permute.xlu0 %389
        %391 = vrot.lane.b32.xlu0 %v258, 109
        %v392 = vpop.permute.xlu0 %391
        %393 = vrot.lane.b32.xlu0 %v259, 109
        %v394 = vpop.permute.xlu0 %393
        %395 = vrot.lane.b32.xlu0 %v260, 109
        %v396 = vpop.permute.xlu0 %395
        %397 = vrot.lane.b32.xlu0 %v261, 109
        %v398 = vpop.permute.xlu0 %397
        %vm399 = vcmp.lt.s32.totalorder %v287, 109
        %v400 = vsel %vm399, %v396, %v398
        %v401 = vsel %vm399, %v394, %v396
        %v402 = vsel %vm399, %v392, %v394
        %v403 = vsel %vm399, %v390, %v392
        %v404 = vsel %vm399, %v388, %v390
        %v405 = vsel %vm399, %v386, %v388
        %v406 = vsel %vm399, %v384, %v386
        %v407 = vsel %vm399, %v382, %v384
        %v408 = vsel %vm399, %v380, %v382
        %v409 = vsel %vm399, %v378, %v380
        %v410 = vsel %vm399, %v376, %v378
        %v411 = vsel %vm399, %v398, %v376
        %412 = vrot.lane.b32.xlu0 %v250, 108
        %v413 = vpop.permute.xlu0 %412
        %414 = vrot.lane.b32.xlu0 %v251, 108
        %v415 = vpop.permute.xlu0 %414
        %416 = vrot.lane.b32.xlu0 %v252, 108
        %v417 = vpop.permute.xlu0 %416
        %418 = vrot.lane.b32.xlu0 %v253, 108
        %v419 = vpop.permute.xlu0 %418
        %420 = vrot.lane.b32.xlu0 %v254, 108
        %v421 = vpop.permute.xlu0 %420
        %422 = vrot.lane.b32.xlu0 %v255, 108
        %v423 = vpop.permute.xlu0 %422
        %424 = vrot.lane.b32.xlu0 %v256, 108
        %v425 = vpop.permute.xlu0 %424
        %426 = vrot.lane.b32.xlu0 %v257, 108
        %v427 = vpop.permute.xlu0 %426
        %428 = vrot.lane.b32.xlu0 %v258, 108
        %v429 = vpop.permute.xlu0 %428
        %430 = vrot.lane.b32.xlu0 %v259, 108
        %v431 = vpop.permute.xlu0 %430
        %432 = vrot.lane.b32.xlu0 %v260, 108
        %v433 = vpop.permute.xlu0 %432
        %434 = vrot.lane.b32.xlu0 %v261, 108
        %v435 = vpop.permute.xlu0 %434
        %vm436 = vcmp.lt.s32.totalorder %v287, 108
        %v437 = vsel %vm436, %v433, %v435
        %v438 = vsel %vm436, %v431, %v433
        %v439 = vsel %vm436, %v429, %v431
        %v440 = vsel %vm436, %v427, %v429
        %v441 = vsel %vm436, %v425, %v427
        %v442 = vsel %vm436, %v423, %v425
        %v443 = vsel %vm436, %v421, %v423
        %v444 = vsel %vm436, %v419, %v421
        %v445 = vsel %vm436, %v417, %v419
        %v446 = vsel %vm436, %v415, %v417
        %v447 = vsel %vm436, %v413, %v415
        %v448 = vsel %vm436, %v435, %v413
        %449 = vrot.lane.b32.xlu0 %v250, 92
        %v450 = vpop.permute.xlu0 %449
        %451 = vrot.lane.b32.xlu0 %v251, 92
        %v452 = vpop.permute.xlu0 %451
        %453 = vrot.lane.b32.xlu0 %v252, 92
        %v454 = vpop.permute.xlu0 %453
        %455 = vrot.lane.b32.xlu0 %v253, 92
        %v456 = vpop.permute.xlu0 %455
        %457 = vrot.lane.b32.xlu0 %v254, 92
        %v458 = vpop.permute.xlu0 %457
        %459 = vrot.lane.b32.xlu0 %v255, 92
        %v460 = vpop.permute.xlu0 %459
        %461 = vrot.lane.b32.xlu0 %v256, 92
        %v462 = vpop.permute.xlu0 %461
        %463 = vrot.lane.b32.xlu0 %v257, 92
        %v464 = vpop.permute.xlu0 %463
        %465 = vrot.lane.b32.xlu0 %v258, 92
        %v466 = vpop.permute.xlu0 %465
        %467 = vrot.lane.b32.xlu0 %v259, 92
        %v468 = vpop.permute.xlu0 %467
        %469 = vrot.lane.b32.xlu0 %v260, 92
        %v470 = vpop.permute.xlu0 %469
        %471 = vrot.lane.b32.xlu0 %v261, 92
        %v472 = vpop.permute.xlu0 %471
        %vm473 = vcmp.lt.s32.totalorder %v287, 92
        %v474 = vsel %vm473, %v470, %v472
        %v475 = vsel %vm473, %v468, %v470
        %v476 = vsel %vm473, %v466, %v468
        %v477 = vsel %vm473, %v464, %v466
        %v478 = vsel %vm473, %v462, %v464
        %v479 = vsel %vm473, %v460, %v462
        %v480 = vsel %vm473, %v458, %v460
        %v481 = vsel %vm473, %v456, %v458
        %v482 = vsel %vm473, %v454, %v456
        %v483 = vsel %vm473, %v452, %v454
        %v484 = vsel %vm473, %v450, %v452
        %v485 = vsel %vm473, %v472, %v450
        %486 = vrot.lane.b32.xlu0 %v250, 91
        %v487 = vpop.permute.xlu0 %486
        %488 = vrot.lane.b32.xlu0 %v251, 91
        %v489 = vpop.permute.xlu0 %488
        %490 = vrot.lane.b32.xlu0 %v252, 91
        %v491 = vpop.permute.xlu0 %490
        %492 = vrot.lane.b32.xlu0 %v253, 91
        %v493 = vpop.permute.xlu0 %492
        %494 = vrot.lane.b32.xlu0 %v254, 91
        %v495 = vpop.permute.xlu0 %494
        %496 = vrot.lane.b32.xlu0 %v255, 91
        %v497 = vpop.permute.xlu0 %496
        %498 = vrot.lane.b32.xlu0 %v256, 91
        %v499 = vpop.permute.xlu0 %498
        %500 = vrot.lane.b32.xlu0 %v257, 91
        %v501 = vpop.permute.xlu0 %500
        %502 = vrot.lane.b32.xlu0 %v258, 91
        %v503 = vpop.permute.xlu0 %502
        %504 = vrot.lane.b32.xlu0 %v259, 91
        %v505 = vpop.permute.xlu0 %504
        %506 = vrot.lane.b32.xlu0 %v260, 91
        %v507 = vpop.permute.xlu0 %506
        %508 = vrot.lane.b32.xlu0 %v261, 91
        %v509 = vpop.permute.xlu0 %508
        %vm510 = vcmp.lt.s32.totalorder %v287, 91
        %v511 = vsel %vm510, %v507, %v509
        %v512 = vsel %vm510, %v505, %v507
        %v513 = vsel %vm510, %v503, %v505
        %v514 = vsel %vm510, %v501, %v503
        %v515 = vsel %vm510, %v499, %v501
        %v516 = vsel %vm510, %v497, %v499
        %v517 = vsel %vm510, %v495, %v497
        %v518 = vsel %vm510, %v493, %v495
        %v519 = vsel %vm510, %v491, %v493
        %v520 = vsel %vm510, %v489, %v491
        %v521 = vsel %vm510, %v487, %v489
        %v522 = vsel %vm510, %v509, %v487
        %523 = vrot.lane.b32.xlu0 %v250, 90
        %v524 = vpop.permute.xlu0 %523
        %525 = vrot.lane.b32.xlu0 %v251, 90
        %v526 = vpop.permute.xlu0 %525
        %527 = vrot.lane.b32.xlu0 %v252, 90
        %v528 = vpop.permute.xlu0 %527
        %529 = vrot.lane.b32.xlu0 %v253, 90
        %v530 = vpop.permute.xlu0 %529
        %531 = vrot.lane.b32.xlu0 %v254, 90
        %v532 = vpop.permute.xlu0 %531
        %533 = vrot.lane.b32.xlu0 %v255, 90
        %v534 = vpop.permute.xlu0 %533
        %535 = vrot.lane.b32.xlu0 %v256, 90
        %v536 = vpop.permute.xlu0 %535
        %537 = vrot.lane.b32.xlu0 %v257, 90
        %v538 = vpop.permute.xlu0 %537
        %539 = vrot.lane.b32.xlu0 %v258, 90
        %v540 = vpop.permute.xlu0 %539
        %541 = vrot.lane.b32.xlu0 %v259, 90
        %v542 = vpop.permute.xlu0 %541
        %543 = vrot.lane.b32.xlu0 %v260, 90
        %v544 = vpop.permute.xlu0 %543
        %545 = vrot.lane.b32.xlu0 %v261, 90
        %v546 = vpop.permute.xlu0 %545
        %vm547 = vcmp.lt.s32.totalorder %v287, 90
        %v548 = vsel %vm547, %v544, %v546
        %v549 = vsel %vm547, %v542, %v544
        %v550 = vsel %vm547, %v540, %v542
        %v551 = vsel %vm547, %v538, %v540
        %v552 = vsel %vm547, %v536, %v538
        %v553 = vsel %vm547, %v534, %v536
        %v554 = vsel %vm547, %v532, %v534
        %v555 = vsel %vm547, %v530, %v532
        %v556 = vsel %vm547, %v528, %v530
        %v557 = vsel %vm547, %v526, %v528
        %v558 = vsel %vm547, %v524, %v526
        %v559 = vsel %vm547, %v546, %v524
        %v560 = vld [vmem:[%s1] sm:$0xff]
        %v561 = vld [vmem:[%s2] sm:$0xff]
        %563 = vset.pattern.permute.xlu0 0
        %564 = vperm.xlu0 %563, %v561
        %v565 = vpop.permute.xlu0 %564
        %vm567 = vcmask 588800
        %v569 = vsel %vm567, %v560, 0
        %571 = vmatpush.msra.mxu0 0.0
        %572 = vmatpush.msra.mxu0 0.0
        %573 = vmatpush.msra.mxu0 0.0
        %574 = vmatpush.msra.mxu0 0.0
        %575 = vmatpush.msra.mxu0 0.0
        %576 = vmatpush.msra.mxu0 0.0
        %577 = vmatpush.msra.mxu0 0.0
        %578 = vmatpush.msra.mxu0 %v558
        %579 = vmatpush.msra.mxu0 %v521
        %580 = vmatpush.msra.mxu0 %v484
        %581 = vmatpush.msra.mxu0 %v447
        %582 = vmatpush.msra.mxu0 %v410
        %583 = vmatpush.msra.mxu0 %v373
        %584 = vmatpush.msra.mxu0 %v336
        %585 = vmatpush.msra.mxu0 %v299
        %586 = vmatpush.msra.mxu0 %v250
        %587 = vmatmul.f32.gmra.mxu0 %v569
        %v588 = vpop.f32.mrf.mxu0
        %v589 = vadd.f32 %v565, %v588
        %590 = vdwg.mxu0
        %591 = vmatpush.msra.mxu0 0.0
        %592 = vmatpush.msra.mxu0 0.0
        %593 = vmatpush.msra.mxu0 0.0
        %594 = vmatpush.msra.mxu0 0.0
        %595 = vmatpush.msra.mxu0 0.0
        %596 = vmatpush.msra.mxu0 0.0
        %597 = vmatpush.msra.mxu0 0.0
        %598 = vmatpush.msra.mxu0 %v557
        %599 = vmatpush.msra.mxu0 %v520
        %600 = vmatpush.msra.mxu0 %v483
        %601 = vmatpush.msra.mxu0 %v446
        %602 = vmatpush.msra.mxu0 %v409
        %603 = vmatpush.msra.mxu0 %v372
        %604 = vmatpush.msra.mxu0 %v335
        %605 = vmatpush.msra.mxu0 %v298
        %606 = vmatpush.msra.mxu0 %v251
        %607 = vmatmul.f32.gmra.mxu0 %v569
        %v608 = vpop.f32.mrf.mxu0
        %v609 = vadd.f32 %v565, %v608
        %610 = vdwg.mxu0
        %611 = vmatpush.msra.mxu0 0.0
        %612 = vmatpush.msra.mxu0 0.0
        %613 = vmatpush.msra.mxu0 0.0
        %614 = vmatpush.msra.mxu0 0.0
        %615 = vmatpush.msra.mxu0 0.0
        %616 = vmatpush.msra.mxu0 0.0
        %617 = vmatpush.msra.mxu0 0.0
        %618 = vmatpush.msra.mxu0 %v556
        %619 = vmatpush.msra.mxu0 %v519
        %620 = vmatpush.msra.mxu0 %v482
        %621 = vmatpush.msra.mxu0 %v445
        %622 = vmatpush.msra.mxu0 %v408
        %623 = vmatpush.msra.mxu0 %v371
        %624 = vmatpush.msra.mxu0 %v334
        %625 = vmatpush.msra.mxu0 %v297
        %626 = vmatpush.msra.mxu0 %v252
        %627 = vmatmul.f32.gmra.mxu0 %v569
        %v628 = vpop.f32.mrf.mxu0
        %v629 = vadd.f32 %v565, %v628
        %630 = vdwg.mxu0
        %631 = vmatpush.msra.mxu0 0.0
        %632 = vmatpush.msra.mxu0 0.0
        %633 = vmatpush.msra.mxu0 0.0
        %634 = vmatpush.msra.mxu0 0.0
        %635 = vmatpush.msra.mxu0 0.0
        %636 = vmatpush.msra.mxu0 0.0
        %637 = vmatpush.msra.mxu0 0.0
        %638 = vmatpush.msra.mxu0 %v555
        %639 = vmatpush.msra.mxu0 %v518
        %640 = vmatpush.msra.mxu0 %v481
        %641 = vmatpush.msra.mxu0 %v444
        %642 = vmatpush.msra.mxu0 %v407
        %643 = vmatpush.msra.mxu0 %v370
        %644 = vmatpush.msra.mxu0 %v333
        %645 = vmatpush.msra.mxu0 %v296
        %646 = vmatpush.msra.mxu0 %v253
        %647 = vmatmul.f32.gmra.mxu0 %v569
        %v648 = vpop.f32.mrf.mxu0
        %v649 = vadd.f32 %v565, %v648
        %650 = vdwg.mxu0
        %651 = vmatpush.msra.mxu0 0.0
        %652 = vmatpush.msra.mxu0 0.0
        %653 = vmatpush.msra.mxu0 0.0
        %654 = vmatpush.msra.mxu0 0.0
        %655 = vmatpush.msra.mxu0 0.0
        %656 = vmatpush.msra.mxu0 0.0
        %657 = vmatpush.msra.mxu0 0.0
        %658 = vmatpush.msra.mxu0 %v554
        %659 = vmatpush.msra.mxu0 %v517
        %660 = vmatpush.msra.mxu0 %v480
        %661 = vmatpush.msra.mxu0 %v443
        %662 = vmatpush.msra.mxu0 %v406
        %663 = vmatpush.msra.mxu0 %v369
        %664 = vmatpush.msra.mxu0 %v332
        %665 = vmatpush.msra.mxu0 %v295
        %666 = vmatpush.msra.mxu0 %v254
        %667 = vmatmul.f32.gmra.mxu0 %v569
        %v668 = vpop.f32.mrf.mxu0
        %v669 = vadd.f32 %v565, %v668
        %670 = vdwg.mxu0
        %671 = vmatpush.msra.mxu0 0.0
        %672 = vmatpush.msra.mxu0 0.0
        %673 = vmatpush.msra.mxu0 0.0
        %674 = vmatpush.msra.mxu0 0.0
        %675 = vmatpush.msra.mxu0 0.0
        %676 = vmatpush.msra.mxu0 0.0
        %677 = vmatpush.msra.mxu0 0.0
        %678 = vmatpush.msra.mxu0 %v553
        %679 = vmatpush.msra.mxu0 %v516
        %680 = vmatpush.msra.mxu0 %v479
        %681 = vmatpush.msra.mxu0 %v442
        %682 = vmatpush.msra.mxu0 %v405
        %683 = vmatpush.msra.mxu0 %v368
        %684 = vmatpush.msra.mxu0 %v331
        %685 = vmatpush.msra.mxu0 %v294
        %686 = vmatpush.msra.mxu0 %v255
        %687 = vmatmul.f32.gmra.mxu0 %v569
        %v688 = vpop.f32.mrf.mxu0
        %v689 = vadd.f32 %v565, %v688
        %690 = vdwg.mxu0
        %691 = vmatpush.msra.mxu0 0.0
        %692 = vmatpush.msra.mxu0 0.0
        %693 = vmatpush.msra.mxu0 0.0
        %694 = vmatpush.msra.mxu0 0.0
        %695 = vmatpush.msra.mxu0 0.0
        %696 = vmatpush.msra.mxu0 0.0
        %697 = vmatpush.msra.mxu0 0.0
        %698 = vmatpush.msra.mxu0 %v552
        %699 = vmatpush.msra.mxu0 %v515
        %700 = vmatpush.msra.mxu0 %v478
        %701 = vmatpush.msra.mxu0 %v441
        %702 = vmatpush.msra.mxu0 %v404
        %703 = vmatpush.msra.mxu0 %v367
        %704 = vmatpush.msra.mxu0 %v330
        %705 = vmatpush.msra.mxu0 %v293
        %706 = vmatpush.msra.mxu0 %v256
        %707 = vmatmul.f32.gmra.mxu0 %v569
        %v708 = vpop.f32.mrf.mxu0
        %v709 = vadd.f32 %v565, %v708
        %710 = vdwg.mxu0
        %711 = vmatpush.msra.mxu0 0.0
        %712 = vmatpush.msra.mxu0 0.0
        %713 = vmatpush.msra.mxu0 0.0
        %714 = vmatpush.msra.mxu0 0.0
        %715 = vmatpush.msra.mxu0 0.0
        %716 = vmatpush.msra.mxu0 0.0
        %717 = vmatpush.msra.mxu0 0.0
        %718 = vmatpush.msra.mxu0 %v551
        %719 = vmatpush.msra.mxu0 %v514
        %720 = vmatpush.msra.mxu0 %v477
        %721 = vmatpush.msra.mxu0 %v440
        %722 = vmatpush.msra.mxu0 %v403
        %723 = vmatpush.msra.mxu0 %v366
        %724 = vmatpush.msra.mxu0 %v329
        %725 = vmatpush.msra.mxu0 %v292
        %726 = vmatpush.msra.mxu0 %v257
        %727 = vmatmul.f32.gmra.mxu0 %v569
        %v728 = vpop.f32.mrf.mxu0
        %v729 = vadd.f32 %v565, %v728
        %730 = vdwg.mxu0
        %731 = vmatpush.msra.mxu0 0.0
        %732 = vmatpush.msra.mxu0 0.0
        %733 = vmatpush.msra.mxu0 0.0
        %734 = vmatpush.msra.mxu0 0.0
        %735 = vmatpush.msra.mxu0 0.0
        %736 = vmatpush.msra.mxu0 0.0
        %737 = vmatpush.msra.mxu0 0.0
        %738 = vmatpush.msra.mxu0 %v550
        %739 = vmatpush.msra.mxu0 %v513
        %740 = vmatpush.msra.mxu0 %v476
        %741 = vmatpush.msra.mxu0 %v439
        %742 = vmatpush.msra.mxu0 %v402
        %743 = vmatpush.msra.mxu0 %v365
        %744 = vmatpush.msra.mxu0 %v328
        %745 = vmatpush.msra.mxu0 %v291
        %746 = vmatpush.msra.mxu0 %v258
        %747 = vmatmul.f32.gmra.mxu0 %v569
        %v748 = vpop.f32.mrf.mxu0
        %v749 = vadd.f32 %v565, %v748
        %750 = vdwg.mxu0
        %751 = vmatpush.msra.mxu0 0.0
        %752 = vmatpush.msra.mxu0 0.0
        %753 = vmatpush.msra.mxu0 0.0
        %754 = vmatpush.msra.mxu0 0.0
        %755 = vmatpush.msra.mxu0 0.0
        %756 = vmatpush.msra.mxu0 0.0
        %757 = vmatpush.msra.mxu0 0.0
        %758 = vmatpush.msra.mxu0 %v549
        %759 = vmatpush.msra.mxu0 %v512
        %760 = vmatpush.msra.mxu0 %v475
        %761 = vmatpush.msra.mxu0 %v438
        %762 = vmatpush.msra.mxu0 %v401
        %763 = vmatpush.msra.mxu0 %v364
        %764 = vmatpush.msra.mxu0 %v327
        %765 = vmatpush.msra.mxu0 %v290
        %766 = vmatpush.msra.mxu0 %v259
        %767 = vmatmul.f32.gmra.mxu0 %v569
        %v768 = vpop.f32.mrf.mxu0
        %v769 = vadd.f32 %v565, %v768
        %770 = vdwg.mxu0
        %771 = vmatpush.msra.mxu0 0.0
        %772 = vmatpush.msra.mxu0 0.0
        %773 = vmatpush.msra.mxu0 0.0
        %774 = vmatpush.msra.mxu0 0.0
        %775 = vmatpush.msra.mxu0 0.0
        %776 = vmatpush.msra.mxu0 0.0
        %777 = vmatpush.msra.mxu0 0.0
        %778 = vmatpush.msra.mxu0 %v548
        %779 = vmatpush.msra.mxu0 %v511
        %780 = vmatpush.msra.mxu0 %v474
        %781 = vmatpush.msra.mxu0 %v437
        %782 = vmatpush.msra.mxu0 %v400
        %783 = vmatpush.msra.mxu0 %v363
        %784 = vmatpush.msra.mxu0 %v326
        %785 = vmatpush.msra.mxu0 %v289
        %786 = vmatpush.msra.mxu0 %v260
        %787 = vmatmul.f32.gmra.mxu0 %v569
        %v788 = vpop.f32.mrf.mxu0
        %v789 = vadd.f32 %v565, %v788
        %790 = vdwg.mxu0
        %791 = vmatpush.msra.mxu0 0.0
        %792 = vmatpush.msra.mxu0 0.0
        %793 = vmatpush.msra.mxu0 0.0
        %794 = vmatpush.msra.mxu0 0.0
        %795 = vmatpush.msra.mxu0 0.0
        %796 = vmatpush.msra.mxu0 0.0
        %797 = vmatpush.msra.mxu0 0.0
        %798 = vmatpush.msra.mxu0 %v559
        %799 = vmatpush.msra.mxu0 %v522
        %800 = vmatpush.msra.mxu0 %v485
        %801 = vmatpush.msra.mxu0 %v448
        %802 = vmatpush.msra.mxu0 %v411
        %803 = vmatpush.msra.mxu0 %v374
        %804 = vmatpush.msra.mxu0 %v337
        %805 = vmatpush.msra.mxu0 %v300
        %806 = vmatpush.msra.mxu0 %v261
        %807 = vmatmul.f32.gmra.mxu0 %v569
        %v808 = vpop.f32.mrf.mxu0
        %v809 = vadd.f32 %v565, %v808
        %810 = vdwg.mxu0
        %v811 = vmax.f32 %v589, 0.0
        %v812 = vmax.f32 %v609, 0.0
        %v813 = vmax.f32 %v629, 0.0
        %v814 = vmax.f32 %v649, 0.0
        %v815 = vmax.f32 %v669, 0.0
        %v816 = vmax.f32 %v689, 0.0
        %v817 = vmax.f32 %v709, 0.0
        %v818 = vmax.f32 %v729, 0.0
        %v819 = vmax.f32 %v749, 0.0
        %v820 = vmax.f32 %v769, 0.0
        %v821 = vmax.f32 %v789, 0.0
        %v822 = vmax.f32 %v809, 0.0
        %v823 = vld [vmem:[%s3] sm:$0xff]
        %v824 = vld [vmem:[%s3 + $0x8] sm:$0xff]
        %v825 = vld [vmem:[%s3 + $0x10] sm:$0xff]
        %v826 = vld [vmem:[%s3 + $0x18] sm:$0xff]
        %v827 = vld [vmem:[%s3 + $0x20] sm:$0xff]
        %v828 = vld [vmem:[%s3 + $0x28] sm:$0xff]
        %v829 = vld [vmem:[%s3 + $0x30] sm:$0xff]
        %v830 = vld [vmem:[%s3 + $0x38] sm:$0xff]
        %v831 = vld [vmem:[%s3 + $0x40] sm:$0xff]
        %v832 = vld [vmem:[%s3 + $0x48] sm:$0xff]
        %v833 = vld [vmem:[%s3 + $0x50] sm:$0xff]
        %v834 = vld [vmem:[%s3 + $0x58] sm:$0xff]
        %v835 = vld [vmem:[%s3 + $0x60] sm:$0xff]
        %v836 = vld [vmem:[%s3 + $0x68] sm:$0xff]
        %v837 = vld [vmem:[%s3 + $0x70] sm:$0xff]
        %v838 = vld [vmem:[%s3 + $0x78] sm:$0xff]
        %v839 = vld [vmem:[%s3 + $0x80] sm:$0xff]
        %v840 = vld [vmem:[%s3 + $0x88] sm:$0xff]
        %v841 = vld [vmem:[%s3 + $0x90] sm:$0xff]
        %v842 = vld [vmem:[%s3 + $0x98] sm:$0xff]
        %v843 = vld [vmem:[%s3 + $0xa0] sm:$0xff]
        %v844 = vld [vmem:[%s3 + $0xa8] sm:$0xff]
        %v845 = vld [vmem:[%s3 + $0xb0] sm:$0xff]
        %v846 = vld [vmem:[%s3 + $0xb8] sm:$0xff]
        %v847 = vld [vmem:[%s3 + $0xc0] sm:$0xff]
        %v848 = vld [vmem:[%s3 + $0xc8] sm:$0xff]
        %v849 = vld [vmem:[%s3 + $0xd0] sm:$0xff]
        %v850 = vld [vmem:[%s3 + $0xd8] sm:$0xff]
        %v851 = vld [vmem:[%s3 + $0xe0] sm:$0xff]
        %v852 = vld [vmem:[%s3 + $0xe8] sm:$0xff]
        %v853 = vld [vmem:[%s3 + $0xf0] sm:$0xff]
        %v854 = vld [vmem:[%s3 + $0xf8] sm:$0xff]
        %v855 = vld [vmem:[%s3 + $0x100] sm:$0xff]
        %v856 = vld [vmem:[%s3 + $0x108] sm:$0xff]
        %v857 = vld [vmem:[%s3 + $0x110] sm:$0xff]
        %v858 = vld [vmem:[%s3 + $0x118] sm:$0xff]
        %v859 = vld [vmem:[%s3 + $0x120] sm:$0xff]
        %v860 = vld [vmem:[%s3 + $0x128] sm:$0xff]
        %v861 = vld [vmem:[%s3 + $0x130] sm:$0xff]
        %v862 = vld [vmem:[%s3 + $0x138] sm:$0xff]
        %v863 = vld [vmem:[%s3 + $0x140] sm:$0xff]
        %v864 = vld [vmem:[%s3 + $0x148] sm:$0xff]
        %v865 = vld [vmem:[%s3 + $0x150] sm:$0xff]
        %v866 = vld [vmem:[%s3 + $0x158] sm:$0xff]
        %v867 = vld [vmem:[%s3 + $0x160] sm:$0xff]
        %v868 = vld [vmem:[%s3 + $0x168] sm:$0xff]
        %v869 = vld [vmem:[%s3 + $0x170] sm:$0xff]
        %v870 = vld [vmem:[%s3 + $0x178] sm:$0xff]
        %871 = vmatpush.xpose.msra.mxu0 0.0
        %872 = vmatpush.xpose.msra.mxu0 0.0
        %873 = vmatpush.xpose.msra.mxu0 0.0
        %874 = vmatpush.xpose.msra.mxu0 0.0
        %875 = vmatpush.xpose.msra.mxu0 0.0
        %876 = vmatpush.xpose.msra.mxu0 0.0
        %877 = vmatpush.xpose.msra.mxu0 0.0
        %878 = vmatpush.xpose.msra.mxu0 0.0
        %879 = vmatpush.xpose.msra.mxu0 0.0
        %880 = vmatpush.xpose.msra.mxu0 0.0
        %881 = vmatpush.xpose.msra.mxu0 0.0
        %882 = vmatpush.xpose.msra.mxu0 0.0
        %883 = vmatpush.xpose.msra.mxu0 0.0
        %884 = vmatpush.xpose.msra.mxu0 0.0
        %885 = vmatpush.xpose.msra.mxu0 0.0
        %886 = vmatpush.xpose.msra.mxu0 %v811
        %887 = vmatmul.f32.gmra.mxu0 %v823
        %v888 = vpop.f32.mrf.mxu0
        %v889 = vadd.f32 0.0, %v888
        %890 = vmatmul.f32.gmra.mxu0 %v835
        %v891 = vpop.f32.mrf.mxu0
        %v892 = vadd.f32 0.0, %v891
        %893 = vmatmul.f32.gmra.mxu0 %v847
        %v894 = vpop.f32.mrf.mxu0
        %v895 = vadd.f32 0.0, %v894
        %896 = vmatmul.f32.gmra.mxu0 %v859
        %v897 = vpop.f32.mrf.mxu0
        %v898 = vadd.f32 0.0, %v897
        %899 = vdwg.mxu0
        %900 = vmatpush.xpose.msra.mxu0 0.0
        %901 = vmatpush.xpose.msra.mxu0 0.0
        %902 = vmatpush.xpose.msra.mxu0 0.0
        %903 = vmatpush.xpose.msra.mxu0 0.0
        %904 = vmatpush.xpose.msra.mxu0 0.0
        %905 = vmatpush.xpose.msra.mxu0 0.0
        %906 = vmatpush.xpose.msra.mxu0 0.0
        %907 = vmatpush.xpose.msra.mxu0 0.0
        %908 = vmatpush.xpose.msra.mxu0 0.0
        %909 = vmatpush.xpose.msra.mxu0 0.0
        %910 = vmatpush.xpose.msra.mxu0 0.0
        %911 = vmatpush.xpose.msra.mxu0 0.0
        %912 = vmatpush.xpose.msra.mxu0 0.0
        %913 = vmatpush.xpose.msra.mxu0 0.0
        %914 = vmatpush.xpose.msra.mxu0 0.0
        %915 = vmatpush.xpose.msra.mxu0 %v812
        %916 = vmatmul.f32.gmra.mxu0 %v824
        %v917 = vpop.f32.mrf.mxu0
        %v918 = vadd.f32 %v889, %v917
        %919 = vmatmul.f32.gmra.mxu0 %v836
        %v920 = vpop.f32.mrf.mxu0
        %v921 = vadd.f32 %v892, %v920
        %922 = vmatmul.f32.gmra.mxu0 %v848
        %v923 = vpop.f32.mrf.mxu0
        %v924 = vadd.f32 %v895, %v923
        %925 = vmatmul.f32.gmra.mxu0 %v860
        %v926 = vpop.f32.mrf.mxu0
        %v927 = vadd.f32 %v898, %v926
        %928 = vdwg.mxu0
        %929 = vmatpush.xpose.msra.mxu0 0.0
        %930 = vmatpush.xpose.msra.mxu0 0.0
        %931 = vmatpush.xpose.msra.mxu0 0.0
        %932 = vmatpush.xpose.msra.mxu0 0.0
        %933 = vmatpush.xpose.msra.mxu0 0.0
        %934 = vmatpush.xpose.msra.mxu0 0.0
        %935 = vmatpush.xpose.msra.mxu0 0.0
        %936 = vmatpush.xpose.msra.mxu0 0.0
        %937 = vmatpush.xpose.msra.mxu0 0.0
        %938 = vmatpush.xpose.msra.mxu0 0.0
        %939 = vmatpush.xpose.msra.mxu0 0.0
        %940 = vmatpush.xpose.msra.mxu0 0.0
        %941 = vmatpush.xpose.msra.mxu0 0.0
        %942 = vmatpush.xpose.msra.mxu0 0.0
        %943 = vmatpush.xpose.msra.mxu0 0.0
        %944 = vmatpush.xpose.msra.mxu0 %v813
        %945 = vmatmul.f32.gmra.mxu0 %v825
        %v946 = vpop.f32.mrf.mxu0
        %v947 = vadd.f32 %v918, %v946
        %948 = vmatmul.f32.gmra.mxu0 %v837
        %v949 = vpop.f32.mrf.mxu0
        %v950 = vadd.f32 %v921, %v949
        %951 = vmatmul.f32.gmra.mxu0 %v849
        %v952 = vpop.f32.mrf.mxu0
        %v953 = vadd.f32 %v924, %v952
        %954 = vmatmul.f32.gmra.mxu0 %v861
        %v955 = vpop.f32.mrf.mxu0
        %v956 = vadd.f32 %v927, %v955
        %957 = vdwg.mxu0
        %958 = vmatpush.xpose.msra.mxu0 0.0
        %959 = vmatpush.xpose.msra.mxu0 0.0
        %960 = vmatpush.xpose.msra.mxu0 0.0
        %961 = vmatpush.xpose.msra.mxu0 0.0
        %962 = vmatpush.xpose.msra.mxu0 0.0
        %963 = vmatpush.xpose.msra.mxu0 0.0
        %964 = vmatpush.xpose.msra.mxu0 0.0
        %965 = vmatpush.xpose.msra.mxu0 0.0
        %966 = vmatpush.xpose.msra.mxu0 0.0
        %967 = vmatpush.xpose.msra.mxu0 0.0
        %968 = vmatpush.xpose.msra.mxu0 0.0
        %969 = vmatpush.xpose.msra.mxu0 0.0
        %970 = vmatpush.xpose.msra.mxu0 0.0
        %971 = vmatpush.xpose.msra.mxu0 0.0
        %972 = vmatpush.xpose.msra.mxu0 0.0
        %973 = vmatpush.xpose.msra.mxu0 %v814
        %974 = vmatmul.f32.gmra.mxu0 %v826
        %v975 = vpop.f32.mrf.mxu0
        %v976 = vadd.f32 %v947, %v975
        %977 = vmatmul.f32.gmra.mxu0 %v838
        %v978 = vpop.f32.mrf.mxu0
        %v979 = vadd.f32 %v950, %v978
        %980 = vmatmul.f32.gmra.mxu0 %v850
        %v981 = vpop.f32.mrf.mxu0
        %v982 = vadd.f32 %v953, %v981
        %983 = vmatmul.f32.gmra.mxu0 %v862
        %v984 = vpop.f32.mrf.mxu0
        %v985 = vadd.f32 %v956, %v984
        %986 = vdwg.mxu0
        %987 = vmatpush.xpose.msra.mxu0 0.0
        %988 = vmatpush.xpose.msra.mxu0 0.0
        %989 = vmatpush.xpose.msra.mxu0 0.0
        %990 = vmatpush.xpose.msra.mxu0 0.0
        %991 = vmatpush.xpose.msra.mxu0 0.0
        %992 = vmatpush.xpose.msra.mxu0 0.0
        %993 = vmatpush.xpose.msra.mxu0 0.0
        %994 = vmatpush.xpose.msra.mxu0 0.0
        %995 = vmatpush.xpose.msra.mxu0 0.0
        %996 = vmatpush.xpose.msra.mxu0 0.0
        %997 = vmatpush.xpose.msra.mxu0 0.0
        %998 = vmatpush.xpose.msra.mxu0 0.0
        %999 = vmatpush.xpose.msra.mxu0 0.0
        %1000 = vmatpush.xpose.msra.mxu0 0.0
        %1001 = vmatpush.xpose.msra.mxu0 0.0
        %1002 = vmatpush.xpose.msra.mxu0 %v815
        %1003 = vmatmul.f32.gmra.mxu0 %v827
        %v1004 = vpop.f32.mrf.mxu0
        %v1005 = vadd.f32 %v976, %v1004
        %1006 = vmatmul.f32.gmra.mxu0 %v839
        %v1007 = vpop.f32.mrf.mxu0
        %v1008 = vadd.f32 %v979, %v1007
        %1009 = vmatmul.f32.gmra.mxu0 %v851
        %v1010 = vpop.f32.mrf.mxu0
        %v1011 = vadd.f32 %v982, %v1010
        %1012 = vmatmul.f32.gmra.mxu0 %v863
        %v1013 = vpop.f32.mrf.mxu0
        %v1014 = vadd.f32 %v985, %v1013
        %1015 = vdwg.mxu0
        %1016 = vmatpush.xpose.msra.mxu0 0.0
        %1017 = vmatpush.xpose.msra.mxu0 0.0
        %1018 = vmatpush.xpose.msra.mxu0 0.0
        %1019 = vmatpush.xpose.msra.mxu0 0.0
        %1020 = vmatpush.xpose.msra.mxu0 0.0
        %1021 = vmatpush.xpose.msra.mxu0 0.0
        %1022 = vmatpush.xpose.msra.mxu0 0.0
        %1023 = vmatpush.xpose.msra.mxu0 0.0
        %1024 = vmatpush.xpose.msra.mxu0 0.0
        %1025 = vmatpush.xpose.msra.mxu0 0.0
        %1026 = vmatpush.xpose.msra.mxu0 0.0
        %1027 = vmatpush.xpose.msra.mxu0 0.0
        %1028 = vmatpush.xpose.msra.mxu0 0.0
        %1029 = vmatpush.xpose.msra.mxu0 0.0
        %1030 = vmatpush.xpose.msra.mxu0 0.0
        %1031 = vmatpush.xpose.msra.mxu0 %v816
        %1032 = vmatmul.f32.gmra.mxu0 %v828
        %v1033 = vpop.f32.mrf.mxu0
        %v1034 = vadd.f32 %v1005, %v1033
        %1035 = vmatmul.f32.gmra.mxu0 %v840
        %v1036 = vpop.f32.mrf.mxu0
        %v1037 = vadd.f32 %v1008, %v1036
        %1038 = vmatmul.f32.gmra.mxu0 %v852
        %v1039 = vpop.f32.mrf.mxu0
        %v1040 = vadd.f32 %v1011, %v1039
        %1041 = vmatmul.f32.gmra.mxu0 %v864
        %v1042 = vpop.f32.mrf.mxu0
        %v1043 = vadd.f32 %v1014, %v1042
        %1044 = vdwg.mxu0
        %1045 = vmatpush.xpose.msra.mxu0 0.0
        %1046 = vmatpush.xpose.msra.mxu0 0.0
        %1047 = vmatpush.xpose.msra.mxu0 0.0
        %1048 = vmatpush.xpose.msra.mxu0 0.0
        %1049 = vmatpush.xpose.msra.mxu0 0.0
        %1050 = vmatpush.xpose.msra.mxu0 0.0
        %1051 = vmatpush.xpose.msra.mxu0 0.0
        %1052 = vmatpush.xpose.msra.mxu0 0.0
        %1053 = vmatpush.xpose.msra.mxu0 0.0
        %1054 = vmatpush.xpose.msra.mxu0 0.0
        %1055 = vmatpush.xpose.msra.mxu0 0.0
        %1056 = vmatpush.xpose.msra.mxu0 0.0
        %1057 = vmatpush.xpose.msra.mxu0 0.0
        %1058 = vmatpush.xpose.msra.mxu0 0.0
        %1059 = vmatpush.xpose.msra.mxu0 0.0
        %1060 = vmatpush.xpose.msra.mxu0 %v817
        %1061 = vmatmul.f32.gmra.mxu0 %v829
        %v1062 = vpop.f32.mrf.mxu0
        %v1063 = vadd.f32 %v1034, %v1062
        %1064 = vmatmul.f32.gmra.mxu0 %v841
        %v1065 = vpop.f32.mrf.mxu0
        %v1066 = vadd.f32 %v1037, %v1065
        %1067 = vmatmul.f32.gmra.mxu0 %v853
        %v1068 = vpop.f32.mrf.mxu0
        %v1069 = vadd.f32 %v1040, %v1068
        %1070 = vmatmul.f32.gmra.mxu0 %v865
        %v1071 = vpop.f32.mrf.mxu0
        %v1072 = vadd.f32 %v1043, %v1071
        %1073 = vdwg.mxu0
        %1074 = vmatpush.xpose.msra.mxu0 0.0
        %1075 = vmatpush.xpose.msra.mxu0 0.0
        %1076 = vmatpush.xpose.msra.mxu0 0.0
        %1077 = vmatpush.xpose.msra.mxu0 0.0
        %1078 = vmatpush.xpose.msra.mxu0 0.0
        %1079 = vmatpush.xpose.msra.mxu0 0.0
        %1080 = vmatpush.xpose.msra.mxu0 0.0
        %1081 = vmatpush.xpose.msra.mxu0 0.0
        %1082 = vmatpush.xpose.msra.mxu0 0.0
        %1083 = vmatpush.xpose.msra.mxu0 0.0
        %1084 = vmatpush.xpose.msra.mxu0 0.0
        %1085 = vmatpush.xpose.msra.mxu0 0.0
        %1086 = vmatpush.xpose.msra.mxu0 0.0
        %1087 = vmatpush.xpose.msra.mxu0 0.0
        %1088 = vmatpush.xpose.msra.mxu0 0.0
        %1089 = vmatpush.xpose.msra.mxu0 %v818
        %1090 = vmatmul.f32.gmra.mxu0 %v830
        %v1091 = vpop.f32.mrf.mxu0
        %v1092 = vadd.f32 %v1063, %v1091
        %1093 = vmatmul.f32.gmra.mxu0 %v842
        %v1094 = vpop.f32.mrf.mxu0
        %v1095 = vadd.f32 %v1066, %v1094
        %1096 = vmatmul.f32.gmra.mxu0 %v854
        %v1097 = vpop.f32.mrf.mxu0
        %v1098 = vadd.f32 %v1069, %v1097
        %1099 = vmatmul.f32.gmra.mxu0 %v866
        %v1100 = vpop.f32.mrf.mxu0
        %v1101 = vadd.f32 %v1072, %v1100
        %1102 = vdwg.mxu0
        %1103 = vmatpush.xpose.msra.mxu0 0.0
        %1104 = vmatpush.xpose.msra.mxu0 0.0
        %1105 = vmatpush.xpose.msra.mxu0 0.0
        %1106 = vmatpush.xpose.msra.mxu0 0.0
        %1107 = vmatpush.xpose.msra.mxu0 0.0
        %1108 = vmatpush.xpose.msra.mxu0 0.0
        %1109 = vmatpush.xpose.msra.mxu0 0.0
        %1110 = vmatpush.xpose.msra.mxu0 0.0
        %1111 = vmatpush.xpose.msra.mxu0 0.0
        %1112 = vmatpush.xpose.msra.mxu0 0.0
        %1113 = vmatpush.xpose.msra.mxu0 0.0
        %1114 = vmatpush.xpose.msra.mxu0 0.0
        %1115 = vmatpush.xpose.msra.mxu0 0.0
        %1116 = vmatpush.xpose.msra.mxu0 0.0
        %1117 = vmatpush.xpose.msra.mxu0 0.0
        %1118 = vmatpush.xpose.msra.mxu0 %v819
        %1119 = vmatmul.f32.gmra.mxu0 %v831
        %v1120 = vpop.f32.mrf.mxu0
        %v1121 = vadd.f32 %v1092, %v1120
        %1122 = vmatmul.f32.gmra.mxu0 %v843
        %v1123 = vpop.f32.mrf.mxu0
        %v1124 = vadd.f32 %v1095, %v1123
        %1125 = vmatmul.f32.gmra.mxu0 %v855
        %v1126 = vpop.f32.mrf.mxu0
        %v1127 = vadd.f32 %v1098, %v1126
        %1128 = vmatmul.f32.gmra.mxu0 %v867
        %v1129 = vpop.f32.mrf.mxu0
        %v1130 = vadd.f32 %v1101, %v1129
        %1131 = vdwg.mxu0
        %1132 = vmatpush.xpose.msra.mxu0 0.0
        %1133 = vmatpush.xpose.msra.mxu0 0.0
        %1134 = vmatpush.xpose.msra.mxu0 0.0
        %1135 = vmatpush.xpose.msra.mxu0 0.0
        %1136 = vmatpush.xpose.msra.mxu0 0.0
        %1137 = vmatpush.xpose.msra.mxu0 0.0
        %1138 = vmatpush.xpose.msra.mxu0 0.0
        %1139 = vmatpush.xpose.msra.mxu0 0.0
        %1140 = vmatpush.xpose.msra.mxu0 0.0
        %1141 = vmatpush.xpose.msra.mxu0 0.0
        %1142 = vmatpush.xpose.msra.mxu0 0.0
        %1143 = vmatpush.xpose.msra.mxu0 0.0
        %1144 = vmatpush.xpose.msra.mxu0 0.0
        %1145 = vmatpush.xpose.msra.mxu0 0.0
        %1146 = vmatpush.xpose.msra.mxu0 0.0
        %1147 = vmatpush.xpose.msra.mxu0 %v820
        %1148 = vmatmul.f32.gmra.mxu0 %v832
        %v1149 = vpop.f32.mrf.mxu0
        %v1150 = vadd.f32 %v1121, %v1149
        %1151 = vmatmul.f32.gmra.mxu0 %v844
        %v1152 = vpop.f32.mrf.mxu0
        %v1153 = vadd.f32 %v1124, %v1152
        %1154 = vmatmul.f32.gmra.mxu0 %v856
        %v1155 = vpop.f32.mrf.mxu0
        %v1156 = vadd.f32 %v1127, %v1155
        %1157 = vmatmul.f32.gmra.mxu0 %v868
        %v1158 = vpop.f32.mrf.mxu0
        %v1159 = vadd.f32 %v1130, %v1158
        %1160 = vdwg.mxu0
        %1161 = vmatpush.xpose.msra.mxu0 0.0
        %1162 = vmatpush.xpose.msra.mxu0 0.0
        %1163 = vmatpush.xpose.msra.mxu0 0.0
        %1164 = vmatpush.xpose.msra.mxu0 0.0
        %1165 = vmatpush.xpose.msra.mxu0 0.0
        %1166 = vmatpush.xpose.msra.mxu0 0.0
        %1167 = vmatpush.xpose.msra.mxu0 0.0
        %1168 = vmatpush.xpose.msra.mxu0 0.0
        %1169 = vmatpush.xpose.msra.mxu0 0.0
        %1170 = vmatpush.xpose.msra.mxu0 0.0
        %1171 = vmatpush.xpose.msra.mxu0 0.0
        %1172 = vmatpush.xpose.msra.mxu0 0.0
        %1173 = vmatpush.xpose.msra.mxu0 0.0
        %1174 = vmatpush.xpose.msra.mxu0 0.0
        %1175 = vmatpush.xpose.msra.mxu0 0.0
        %1176 = vmatpush.xpose.msra.mxu0 %v821
        %1177 = vmatmul.f32.gmra.mxu0 %v833
        %v1178 = vpop.f32.mrf.mxu0
        %v1179 = vadd.f32 %v1150, %v1178
        %1180 = vmatmul.f32.gmra.mxu0 %v845
        %v1181 = vpop.f32.mrf.mxu0
        %v1182 = vadd.f32 %v1153, %v1181
        %1183 = vmatmul.f32.gmra.mxu0 %v857
        %v1184 = vpop.f32.mrf.mxu0
        %v1185 = vadd.f32 %v1156, %v1184
        %1186 = vmatmul.f32.gmra.mxu0 %v869
        %v1187 = vpop.f32.mrf.mxu0
        %v1188 = vadd.f32 %v1159, %v1187
        %1189 = vdwg.mxu0
        %1190 = vmatpush.xpose.msra.mxu0 0.0
        %1191 = vmatpush.xpose.msra.mxu0 0.0
        %1192 = vmatpush.xpose.msra.mxu0 0.0
        %1193 = vmatpush.xpose.msra.mxu0 0.0
        %1194 = vmatpush.xpose.msra.mxu0 0.0
        %1195 = vmatpush.xpose.msra.mxu0 0.0
        %1196 = vmatpush.xpose.msra.mxu0 0.0
        %1197 = vmatpush.xpose.msra.mxu0 0.0
        %1198 = vmatpush.xpose.msra.mxu0 0.0
        %1199 = vmatpush.xpose.msra.mxu0 0.0
        %1200 = vmatpush.xpose.msra.mxu0 0.0
        %1201 = vmatpush.xpose.msra.mxu0 0.0
        %1202 = vmatpush.xpose.msra.mxu0 0.0
        %1203 = vmatpush.xpose.msra.mxu0 0.0
        %1204 = vmatpush.xpose.msra.mxu0 0.0
        %1205 = vmatpush.xpose.msra.mxu0 %v822
        %1206 = vmatmul.f32.gmra.mxu0 %v834
        %v1207 = vpop.f32.mrf.mxu0
        %v1208 = vadd.f32 %v1179, %v1207
        %1209 = vmatmul.f32.gmra.mxu0 %v846
        %v1210 = vpop.f32.mrf.mxu0
        %v1211 = vadd.f32 %v1182, %v1210
        %1212 = vmatmul.f32.gmra.mxu0 %v858
        %v1213 = vpop.f32.mrf.mxu0
        %v1214 = vadd.f32 %v1185, %v1213
        %1215 = vmatmul.f32.gmra.mxu0 %v870
        %v1216 = vpop.f32.mrf.mxu0
        %v1217 = vadd.f32 %v1188, %v1216
        %1218 = vdwg.mxu0
        %v1219 = vld [vmem:[%s4] sm:$0xff]
        %s1220 = scalar_lea.vmem %s4, 8
        %v1221 = vld [vmem:[%s1220] sm:$0xff]
        %vm1222 = vcmask 64512
        %v1224 = vsel %vm1222, %v1211, 0
        %1226 = vmatpush.msra.mxu0 0.0
        %1227 = vmatpush.msra.mxu0 0.0
        %1228 = vmatpush.msra.mxu0 0.0
        %1229 = vmatpush.msra.mxu0 0.0
        %1230 = vmatpush.msra.mxu0 0.0
        %1231 = vmatpush.msra.mxu0 0.0
        %1232 = vmatpush.msra.mxu0 0.0
        %1233 = vmatpush.msra.mxu0 0.0
        %1234 = vmatpush.msra.mxu0 0.0
        %1235 = vmatpush.msra.mxu0 0.0
        %1236 = vmatpush.msra.mxu0 0.0
        %1237 = vmatpush.msra.mxu0 0.0
        %1238 = vmatpush.msra.mxu0 0.0
        %1239 = vmatpush.msra.mxu0 0.0
        %1240 = vmatpush.msra.mxu0 0.0
        %1241 = vmatpush.msra.mxu0 %v1221
        %1242 = vmatmul.f32.gmra.mxu0 %v1224
        %v1243 = vpop.f32.mrf.mxu0
        %v1244 = vadd.f32 0.0, %v1243
        %1245 = vdwg.mxu0
        %v1247 = vsel %vm1222, %v1208, 0
        %1249 = vmatpush.msra.mxu0 0.0
        %1250 = vmatpush.msra.mxu0 0.0
        %1251 = vmatpush.msra.mxu0 0.0
        %1252 = vmatpush.msra.mxu0 0.0
        %1253 = vmatpush.msra.mxu0 0.0
        %1254 = vmatpush.msra.mxu0 0.0
        %1255 = vmatpush.msra.mxu0 0.0
        %1256 = vmatpush.msra.mxu0 0.0
        %1257 = vmatpush.msra.mxu0 0.0
        %1258 = vmatpush.msra.mxu0 0.0
        %1259 = vmatpush.msra.mxu0 0.0
        %1260 = vmatpush.msra.mxu0 0.0
        %1261 = vmatpush.msra.mxu0 0.0
        %1262 = vmatpush.msra.mxu0 0.0
        %1263 = vmatpush.msra.mxu0 0.0
        %1264 = vmatpush.msra.mxu0 %v1219
        %1265 = vmatmul.f32.gmra.mxu0 %v1247
        %v1266 = vpop.f32.mrf.mxu0
        %v1267 = vadd.f32 %v1244, %v1266
        %1268 = vdwg.mxu0
        %s1269 = scalar_lea.vmem %s4, 16
        %v1270 = vld [vmem:[%s1269] sm:$0xff]
        %v1272 = vsel %vm1222, %v1214, 0
        %1274 = vmatpush.msra.mxu0 0.0
        %1275 = vmatpush.msra.mxu0 0.0
        %1276 = vmatpush.msra.mxu0 0.0
        %1277 = vmatpush.msra.mxu0 0.0
        %1278 = vmatpush.msra.mxu0 0.0
        %1279 = vmatpush.msra.mxu0 0.0
        %1280 = vmatpush.msra.mxu0 0.0
        %1281 = vmatpush.msra.mxu0 0.0
        %1282 = vmatpush.msra.mxu0 0.0
        %1283 = vmatpush.msra.mxu0 0.0
        %1284 = vmatpush.msra.mxu0 0.0
        %1285 = vmatpush.msra.mxu0 0.0
        %1286 = vmatpush.msra.mxu0 0.0
        %1287 = vmatpush.msra.mxu0 0.0
        %1288 = vmatpush.msra.mxu0 0.0
        %1289 = vmatpush.msra.mxu0 %v1270
        %1290 = vmatmul.f32.gmra.mxu0 %v1272
        %v1291 = vpop.f32.mrf.mxu0
        %v1292 = vadd.f32 0.0, %v1291
        %1293 = vdwg.mxu0
        %v1294 = vadd.f32 %v1267, %v1292
        %s1295 = scalar_lea.vmem %s4, 24
        %v1296 = vld [vmem:[%s1295] sm:$0xff]
        %v1298 = vsel %vm1222, %v1217, 0
        %1300 = vmatpush.msra.mxu0 0.0
        %1301 = vmatpush.msra.mxu0 0.0
        %1302 = vmatpush.msra.mxu0 0.0
        %1303 = vmatpush.msra.mxu0 0.0
        %1304 = vmatpush.msra.mxu0 0.0
        %1305 = vmatpush.msra.mxu0 0.0
        %1306 = vmatpush.msra.mxu0 0.0
        %1307 = vmatpush.msra.mxu0 0.0
        %1308 = vmatpush.msra.mxu0 0.0
        %1309 = vmatpush.msra.mxu0 0.0
        %1310 = vmatpush.msra.mxu0 0.0
        %1311 = vmatpush.msra.mxu0 0.0
        %1312 = vmatpush.msra.mxu0 0.0
        %1313 = vmatpush.msra.mxu0 0.0
        %1314 = vmatpush.msra.mxu0 0.0
        %1315 = vmatpush.msra.mxu0 %v1296
        %1316 = vmatmul.f32.gmra.mxu0 %v1298
        %v1317 = vpop.f32.mrf.mxu0
        %v1318 = vadd.f32 0.0, %v1317
        %1319 = vdwg.mxu0
        %v1320 = vadd.f32 %v1294, %v1318
        %v1321 = vld [vmem:[%s5] sm:$0x1]
        %v1323 = vperm.slane %v1321, 0
        %v1325 = vadd.f32 %v1320, %v1323
        %1326 = vst [vmem:[%s244] sm:$0xf] %v1325
        %s1327 = sand.u32 %s159, 1
        %s1328 = scalar_lea.sflag [#allocation3], %s1327
        %s1329 = sand.u32 %s159, 1
        %s1330 = smul.addr %s1329, 4
        %s1331 = scalar_lea.vmem [#allocation2], %s1330
        // Predicated region
        $region45: #{forward.1} parent=43 // pred_check
          %p1332 = pneg %p169
        $region46: #{forward.1} parent=43 // pred_check_branch
          %1334 = sbr.rel (%p1332) target = $region48
        $region47: #{forward.1} parent=43 // pred_region
          %1336 = vsyncadd %s1328, 0
          %s1337 = smul.addr %s20, 4
          %s1338 = scalar_lea.hbm %s6, %s1337
          %s1340 = sshll.u32 %s1331, 4
          %s1341 = int_to_ptr.vmem [resolvable:$true] %s1340
          %s1342 = sshll.u32 %s1338, 4
          %s1343 = int_to_ptr.hbm [resolvable:$true] %s1342
          %1345 = dma.vmem_to_hbm [thread:$0]  %s1341, 64, %s1343, %s1328
        $region48: #{forward.1} parent=43 // pred_fallthru
          _
      $region44: #{forward.1} parent=5 // pred_fallthru
        _
      %p1346 = scmp.le.s32.totalorder 2, %s15
      // Predicated region
      $region49: #{forward.1} parent=5 // pred_check
        %p1347 = pneg %p1346
      $region50: #{forward.1} parent=5 // pred_check_branch
        %1349 = sbr.rel (%p1347) target = $region52
      $region51: #{forward.1} parent=5 // pred_region
        %s1350 = ssub.s32 %s15, 2
        // Predicated region
        $region53: #{forward.1} parent=51 // pred_check
          %p1351 = pneg %p175
        $region54: #{forward.1} parent=51 // pred_check_branch
          %1353 = sbr.rel (%p1351) target = $region56
        $region55: #{forward.1} parent=51 // pred_region
          %s1354 = sand.u32 %s160, 1
          %s1355 = scalar_lea.sflag [#allocation3], %s1354
          %s1356 = sand.u32 %s160, 1
          %s1357 = smul.addr %s1356, 4
          %s1358 = scalar_lea.vmem [#allocation2], %s1357
          %1360 = dma.done %s1355, 64
        $region56: #{forward.1} parent=51 // pred_fallthru
          _
      $region52: #{forward.1} parent=5 // pred_fallthru
        _
    $region6: #{forward.1} parent=1 // loop_footer
      %s19 = sadd.s32 1, %s15
    $region7: #{forward.1} parent=1 // loop_footer_branch
      %14 = sbr.rel target = $region3
    $region8: #{forward.1} parent=1 // loop_exit
      _
    %1361 = vsyncpa [#allocation3], 1
    %s1362 = scalar_lea.sflag [#allocation3], 1
    %1363 = vsyncpa %s1362, 1

</llo_original>
